<compile_context>
chip_gen: v6e
topology: v6e:2x2x1
jax: 0.10.0
libtpu: 0.0.40
codegen_flags: <defaults>
</compile_context>

<pallas_src>
import jax
import jax.numpy as jnp
from jax.experimental import pallas as pl
from jax.experimental.pallas import tpu as pltpu

KH = KW = 3          # kernel_size=3
PAD = 1              # padding=1 (stride=1)
NEG_SLOPE = 0.01     # nn.LeakyReLU() default
BN_EPS = 1e-5        # nn.BatchNorm2d default
LANE = 128
SUBLANE = 8
VMEM_LIMIT = 48 * 1024 * 1024    # safe on v5e/v6e (128 MiB physical) and v7x (64 MiB)
VMEM_BUDGET = 40 * 1024 * 1024   # what the row-tile chooser is allowed to plan for


def _round_up(x, m):
    return (x + m - 1) // m * m


def _pick_tile(n, target, quantum=SUBLANE):
    """Largest divisor of `n` that is a multiple of `quantum` and <= target (else n)."""
    best = None
    t = quantum
    while t <= min(n, target):
        if n % t == 0:
            best = t
        t += quantum
    return best if best is not None else n


def _choose_row_tile(h, w_p, cf, tcout, target_m=512):
    """Row tile: M = TH*W_p >= ~512 for the 256-wide MXU, clipped by a ~40 MiB VMEM budget
    (double-buffered resident image + double-buffered bf16 y tile + f32 accumulator)."""
    th = _round_up(max(SUBLANE, -(-target_m // w_p)), SUBLANE)
    th = min(th, _round_up(h, SUBLANE))
    cf_l = _round_up(cf, LANE)                       # conservative lane-padded VMEM footprint
    while th > SUBLANE:
        hp_tot = _round_up(h, th) + 2 * PAD
        used = (2 * hp_tot * w_p * cf_l * 2          # resident image (bf16, double-buffered)
                + 2 * th * w_p * tcout * 2           # y tile (bf16, double-buffered)
                + th * w_p * tcout * 4               # f32 accumulator
                + 2 * KH * _round_up(cf, SUBLANE) * tcout * 2)   # weight slab
        if used <= VMEM_BUDGET:
            break
        th -= SUBLANE
    return th


# ------------------------------------------------------------------------------ forward


@jax.jit
def basic_conv_forward(x_nchw, w_oihw, gamma, beta):
    N, Cin, H, W = x_nchw.shape
    Cout = w_oihw.shape[0]

    Cf = KW * Cin                                     # kw-folded input channels (no 128 pad)
    Cout_p = _round_up(Cout, LANE)                    # lane-dense conv/BN outputs
    TCout = 2 * LANE if Cout_p % (2 * LANE) == 0 else LANE
    W_p = _round_up(W, SUBLANE)
    TH = _choose_row_tile(H, W_p, Cf, TCout)
    H_p = _round_up(H, TH)
    n_ht = H_p // TH
    n_ct = Cout_p // TCout
    Hp_tot = H_p + 2 * PAD

    # ---- input glue: NCHW -> NHWC, zero halo + pad H/W to tile multiples, fold the 3 kw taps
    # into the channel axis, cast bf16 (one fused XLA pass).
    # TODO(synk): accept/return NHWC end-to-end so this transpose pass disappears entirely.
    x_nhwc = jnp.transpose(x_nchw, (0, 2, 3, 1))
    xpad = jnp.pad(x_nhwc, ((0, 0), (PAD, PAD + (H_p - H)), (PAD, PAD + (W_p - W)), (0, 0)))
    xf = jnp.concatenate([xpad[:, :, kw:kw + W_p, :] for kw in range(KW)],
                         axis=-1).astype(jnp.bfloat16)            # (N, Hp_tot, W_p, Cf)

    # OIHW -> (kh, kw*cin, cout_p): one (Cf, TCout) weight slab per kh tap.
    w_fold = jnp.transpose(w_oihw, (2, 3, 1, 0)).reshape(KH, Cf, Cout)
    w_fold = jnp.pad(w_fold, ((0, 0), (0, 0), (0, Cout_p - Cout))).astype(jnp.bfloat16)

    def conv_kernel(xf_ref, w_ref, y_ref, sums_ref):
        # xf_ref  : (1, Hp_tot, W_p, Cf)  bf16  whole kw-folded image (resident per batch elem)
        # w_ref   : (KH, Cf, TCout)       bf16
        # y_ref   : (1, TH, W_p, TCout)   bf16  conv output tile (lane-dense)
        # sums_ref: (1, 1, 8, TCout)      f32   rows 0/1 = masked sum / sum-of-squares
        th, w_p, tcout = y_ref.shape[1], y_ref.shape[2], y_ref.shape[3]
        cf = xf_ref.shape[3]
        m = th * w_p
        h0 = pl.multiple_of(pl.program_id(2) * th, th)

        # One 2-D (M = TH*W_p) x Cf x TCout MXU contraction per kh tap; the kh taps are
        # leading-dim views of the resident image block, so there is no im2col copy at all.
        acc = None
        for kh in range(KH):                          # static 3-tap unroll
            xk = xf_ref[0, pl.ds(h0 + kh, th), :, :].reshape(m, cf)
            part = jnp.dot(xk, w_ref[kh], preferred_element_type=jnp.float32)
            acc = part if acc is None else acc + part
        acc3 = acc.reshape(th, w_p, tcout)

        y_ref[...] = acc3[None].astype(y_ref.dtype)   # bf16 intermediate: halved HBM traffic

        # BatchNorm partials from the f32 accumulator; padded rows/cols masked out.
        if (H_p != H) or (W_p != W):
            rows = jax.lax.broadcasted_iota(jnp.int32, (th, w_p), 0) + h0
            cols = jax.lax.broadcasted_iota(jnp.int32, (th, w_p), 1)
            acc_s = jnp.where(((rows < H) & (cols < W))[:, :, None], acc3, 0.0)
        else:
            acc_s = acc3
        s1 = jnp.sum(acc_s, axis=(0, 1))
        s2 = jnp.sum(acc_s * acc_s, axis=(0, 1))
        sums_ref[0, 0, :, :] = jnp.concatenate(
            [s1[None], s2[None], jnp.zeros((SUBLANE - 2, tcout), jnp.float32)], axis=0)

    conv_cost = pl.CostEstimate(
        flops=2 * N * H_p * W_p * Cout_p * KH * Cf,
        transcendentals=0,
        bytes_accessed=(N * Hp_tot * W_p * Cf * 2 + KH * Cf * Cout_p * 2
                        + N * H_p * W_p * Cout_p * 2 + N * n_ht * SUBLANE * Cout_p * 4))

    y, sums = pl.pallas_call(
        conv_kernel,
        grid=(N, n_ct, n_ht),
        in_specs=[
            # Whole kw-folded image per batch element; its block index is constant over the
            # inner (cout, row-tile) axes so it is DMA'd once per image and revisited.
            # TODO(synk): for very large H*W switch to row-halo input tiles via manual DMA.
            pl.BlockSpec((1, Hp_tot, W_p, Cf), lambda n, c, h: (n, 0, 0, 0)),
            pl.BlockSpec((KH, Cf, TCout), lambda n, c, h: (0, 0, c)),
        ],
        out_specs=(
            pl.BlockSpec((1, TH, W_p, TCout), lambda n, c, h: (n, h, 0, c)),
            pl.BlockSpec((1, 1, SUBLANE, TCout), lambda n, c, h: (n, h, 0, c)),
        ),
        out_shape=(
            jax.ShapeDtypeStruct((N, H_p, W_p, Cout_p), jnp.bfloat16),
            jax.ShapeDtypeStruct((N, n_ht, SUBLANE, Cout_p), jnp.float32),
        ),
        compiler_params=pltpu.CompilerParams(
            dimension_semantics=("parallel", "parallel", "parallel"),
            vmem_limit_bytes=VMEM_LIMIT),
        cost_estimate=conv_cost,
    )(xf, w_fold)

    # ---- BatchNorm2d training-mode statistics folded into per-channel scale/shift.
    # TODO(synk): running_mean/running_var (momentum) buffers are not updated here.
    count = jnp.float32(N * H * W)
    s1 = jnp.sum(sums[:, :, 0, :], axis=(0, 1))
    s2 = jnp.sum(sums[:, :, 1, :], axis=(0, 1))
    mean = s1 / count
    var = jnp.maximum(s2 / count - mean * mean, 0.0)        # biased (training-mode) variance
    inv = jax.lax.rsqrt(var + BN_EPS)
    ch_mask = jnp.arange(Cout_p) < Cout                     # padded lanes -> scale=shift=0
    gamma_p = jnp.pad(gamma.astype(jnp.float32), (0, Cout_p - Cout))
    beta_p = jnp.pad(beta.astype(jnp.float32), (0, Cout_p - Cout))
    scale = jnp.where(ch_mask, gamma_p * inv, 0.0).reshape(1, Cout_p)
    shift = jnp.where(ch_mask, beta_p - mean * gamma_p * inv, 0.0).reshape(1, Cout_p)

    def bn_lrelu_kernel(y_ref, scale_ref, shift_ref, o_ref):
        sc = scale_ref[...][:, None, None, :]
        sh = shift_ref[...][:, None, None, :]
        z = y_ref[...].astype(jnp.float32) * sc + sh
        o_ref[...] = jnp.where(z > 0, z, NEG_SLOPE * z)     # LeakyReLU(0.01)

    # Mem-bound elementwise pass: big blocks (~2 MiB of bf16 input per step) so per-step
    # overhead is amortized; decoupled from the conv row tile.
    TBH = _pick_tile(H_p, max(SUBLANE, (2 * 1024 * 1024) // (W_p * Cout_p * 2)))
    out_nhwc = pl.pallas_call(
        bn_lrelu_kernel,
        grid=(N, H_p // TBH),
        in_specs=[
            pl.BlockSpec((1, TBH, W_p, Cout_p), lambda n, h: (n, h, 0, 0)),
            pl.BlockSpec((1, Cout_p), lambda n, h: (0, 0)),
            pl.BlockSpec((1, Cout_p), lambda n, h: (0, 0)),
        ],
        out_specs=pl.BlockSpec((1, TBH, W_p, Cout_p), lambda n, h: (n, h, 0, 0)),
        out_shape=jax.ShapeDtypeStruct((N, H_p, W_p, Cout_p), jnp.float32),
        compiler_params=pltpu.CompilerParams(
            dimension_semantics=("parallel", "parallel"),
            vmem_limit_bytes=VMEM_LIMIT),
    )(y, scale, shift)

    # ---- output glue back to the PyTorch NCHW convention (crop channel/spatial padding).
    # TODO(synk): when W >= 128, write NCHW directly from the BN kernel to drop this pass.
    return jnp.transpose(out_nhwc[:, :H, :W, :Cout], (0, 3, 1, 2))


# ------------------------------------------------------------------------------ reference


def reference_forward(x_nchw, w_oihw, gamma, beta, matmul_dtype=jnp.float32):
    # Conv -> training-mode BatchNorm2d -> LeakyReLU, in NCHW.  `matmul_dtype=bf16`
    # reproduces the MXU input precision (bf16 inputs, f32 accumulation).
    x = x_nchw.astype(matmul_dtype).astype(jnp.float32)
    w = w_oihw.astype(matmul_dtype).astype(jnp.float32)
    conv = jax.lax.conv_general_dilated(
        x, w, window_strides=(1, 1), padding=((PAD, PAD), (PAD, PAD)),
        dimension_numbers=("NCHW", "OIHW", "NCHW"))
    mean = jnp.mean(conv, axis=(0, 2, 3), keepdims=True)
    var = jnp.mean((conv - mean) ** 2, axis=(0, 2, 3), keepdims=True)
    z = (conv - mean) * jax.lax.rsqrt(var + BN_EPS)
    z = z * gamma.reshape(1, -1, 1, 1) + beta.reshape(1, -1, 1, 1)
    return jnp.where(z > 0, z, NEG_SLOPE * z)


if __name__ == "__main__":
    key = jax.random.PRNGKey(0)
    kx, kw_, kg, kb = jax.random.split(key, 4)

    N, Cin, H, W = 2, 4, 16, 16
    Cout = 8

    x = jax.random.normal(kx, (N, Cin, H, W), dtype=jnp.float32)
    # Conv2d weight in PyTorch OIHW layout, deterministic synthetic init.
    w_oihw = 0.1 * jax.random.normal(kw_, (Cout, Cin, KH, KW), dtype=jnp.float32)
    # BatchNorm affine params (perturbed from the PyTorch default gamma=1, beta=0).
    gamma = 1.0 + 0.1 * jax.random.normal(kg, (Cout,), dtype=jnp.float32)
    beta = 0.1 * jax.random.normal(kb, (Cout,), dtype=jnp.float32)

    out = jax.block_until_ready(basic_conv_forward(x, w_oihw, gamma, beta))
    assert out.shape == (N, Cout, H, W)

    # Check vs a reference with matched MXU input precision (bf16 inputs, f32 accumulate);
    # tolerance also covers the bf16 rounding of the stored conv intermediate.
    ref_bf16 = jax.block_until_ready(
        reference_forward(x, w_oihw, gamma, beta, matmul_dtype=jnp.bfloat16))
    assert jnp.allclose(out, ref_bf16, atol=2e-2, rtol=2e-2), (
        float(jnp.max(jnp.abs(out - ref_bf16))))

    # Loose check vs the full-f32 reference (adds the bf16 MXU-input rounding).
    ref_f32 = jax.block_until_ready(reference_forward(x, w_oihw, gamma, beta))
    assert jnp.allclose(out, ref_f32, atol=5e-2, rtol=5e-2), (
        float(jnp.max(jnp.abs(out - ref_f32))))

    print("KERNEL_OK")
</pallas_src>

<mosaic_0001>
module attributes {stable_mosaic.version = 11 : i64} {
  func.func @conv_kernel(%arg0: i32, %arg1: i32, %arg2: i32, %arg3: memref<1x18x16x12xbf16, #tpu.memory_space<vmem>>, %arg4: memref<3x12x128xbf16, #tpu.memory_space<vmem>>, %arg5: memref<1x16x16x128xbf16, #tpu.memory_space<vmem>>, %arg6: memref<1x1x8x128xf32, #tpu.memory_space<vmem>>) attributes {dimension_semantics = [#tpu.dimension_semantics<parallel>, #tpu.dimension_semantics<parallel>, #tpu.dimension_semantics<parallel>], iteration_bounds = array<i64: 2, 1, 1>, scalar_prefetch = 0 : i64, scratch_operands = 0 : i64, tpu.core_type = #tpu.core_type<tc>, window_params = [{transform_indices = @transform_0, window_bounds = array<i64: 1, 18, 16, 12>}, {transform_indices = @transform_1, window_bounds = array<i64: 3, 12, 128>}, {transform_indices = @transform_2, window_bounds = array<i64: 1, 16, 16, 128>}, {transform_indices = @transform_3, window_bounds = array<i64: 1, 1, 8, 128>}]} {
    %c16_i32 = arith.constant 16 : i32
    %0 = arith.muli %arg2, %c16_i32 : i32
    %1 = tpu.assume_multiple %0, 16 : i32
    %c0_i32 = arith.constant 0 : i32
    %2 = arith.addi %1, %c0_i32 : i32
    %c0 = arith.constant 0 : index
    %3 = arith.index_cast %2 : i32 to index
    %c0_0 = arith.constant 0 : index
    %c0_1 = arith.constant 0 : index
    %4 = vector.load %arg3[%c0, %3, %c0_0, %c0_1] : memref<1x18x16x12xbf16, #tpu.memory_space<vmem>>, vector<1x16x16x12xbf16>
    %5 = vector.shape_cast %4 : vector<1x16x16x12xbf16> to vector<16x16x12xbf16>
    %6 = vector.shape_cast %5 : vector<16x16x12xbf16> to vector<256x12xbf16>
    %c0_2 = arith.constant 0 : index
    %c0_3 = arith.constant 0 : index
    %c0_4 = arith.constant 0 : index
    %7 = vector.load %arg4[%c0_2, %c0_3, %c0_4] : memref<3x12x128xbf16, #tpu.memory_space<vmem>>, vector<1x12x128xbf16>
    %8 = vector.shape_cast %7 : vector<1x12x128xbf16> to vector<12x128xbf16>
    %cst = arith.constant dense<0.000000e+00> : vector<256x128xf32>
    %9 = tpu.matmul %6, %8, %cst {dimension_numbers = #tpu.dot_dimension_numbers<[1], [0], [0], [1], [0, 0, 1, 1], [], []>} : vector<256x12xbf16>, vector<12x128xbf16>, vector<256x128xf32> -> vector<256x128xf32>
    %c1_i32 = arith.constant 1 : i32
    %10 = arith.addi %1, %c1_i32 : i32
    %c0_5 = arith.constant 0 : index
    %11 = arith.index_cast %10 : i32 to index
    %c0_6 = arith.constant 0 : index
    %c0_7 = arith.constant 0 : index
    %12 = vector.load %arg3[%c0_5, %11, %c0_6, %c0_7] : memref<1x18x16x12xbf16, #tpu.memory_space<vmem>>, vector<1x16x16x12xbf16>
    %13 = vector.shape_cast %12 : vector<1x16x16x12xbf16> to vector<16x16x12xbf16>
    %14 = vector.shape_cast %13 : vector<16x16x12xbf16> to vector<256x12xbf16>
    %c1 = arith.constant 1 : index
    %c0_8 = arith.constant 0 : index
    %c0_9 = arith.constant 0 : index
    %15 = vector.load %arg4[%c1, %c0_8, %c0_9] : memref<3x12x128xbf16, #tpu.memory_space<vmem>>, vector<1x12x128xbf16>
    %16 = vector.shape_cast %15 : vector<1x12x128xbf16> to vector<12x128xbf16>
    %cst_10 = arith.constant dense<0.000000e+00> : vector<256x128xf32>
    %17 = tpu.matmul %14, %16, %cst_10 {dimension_numbers = #tpu.dot_dimension_numbers<[1], [0], [0], [1], [0, 0, 1, 1], [], []>} : vector<256x12xbf16>, vector<12x128xbf16>, vector<256x128xf32> -> vector<256x128xf32>
    %18 = arith.addf %9, %17 : vector<256x128xf32>
    %c2_i32 = arith.constant 2 : i32
    %19 = arith.addi %1, %c2_i32 : i32
    %c0_11 = arith.constant 0 : index
    %20 = arith.index_cast %19 : i32 to index
    %c0_12 = arith.constant 0 : index
    %c0_13 = arith.constant 0 : index
    %21 = vector.load %arg3[%c0_11, %20, %c0_12, %c0_13] : memref<1x18x16x12xbf16, #tpu.memory_space<vmem>>, vector<1x16x16x12xbf16>
    %22 = vector.shape_cast %21 : vector<1x16x16x12xbf16> to vector<16x16x12xbf16>
    %23 = vector.shape_cast %22 : vector<16x16x12xbf16> to vector<256x12xbf16>
    %c2 = arith.constant 2 : index
    %c0_14 = arith.constant 0 : index
    %c0_15 = arith.constant 0 : index
    %24 = vector.load %arg4[%c2, %c0_14, %c0_15] : memref<3x12x128xbf16, #tpu.memory_space<vmem>>, vector<1x12x128xbf16>
    %25 = vector.shape_cast %24 : vector<1x12x128xbf16> to vector<12x128xbf16>
    %cst_16 = arith.constant dense<0.000000e+00> : vector<256x128xf32>
    %26 = tpu.matmul %23, %25, %cst_16 {dimension_numbers = #tpu.dot_dimension_numbers<[1], [0], [0], [1], [0, 0, 1, 1], [], []>} : vector<256x12xbf16>, vector<12x128xbf16>, vector<256x128xf32> -> vector<256x128xf32>
    %27 = arith.addf %18, %26 : vector<256x128xf32>
    %28 = vector.shape_cast %27 : vector<256x128xf32> to vector<16x16x128xf32>
    %29 = vector.shape_cast %28 : vector<16x16x128xf32> to vector<1x16x16x128xf32>
    %30 = arith.truncf %29 : vector<1x16x16x128xf32> to vector<1x16x16x128xbf16>
    %c0_17 = arith.constant 0 : index
    %c0_18 = arith.constant 0 : index
    %c0_19 = arith.constant 0 : index
    %c0_20 = arith.constant 0 : index
    %31 = vector.load %arg5[%c0_17, %c0_18, %c0_19, %c0_20] : memref<1x16x16x128xbf16, #tpu.memory_space<vmem>>, vector<1x16x16x128xbf16>
    tpu.vector_store %arg5[%c0_17, %c0_18, %c0_19, %c0_20], %30 {strides = array<i32>} : memref<1x16x16x128xbf16, #tpu.memory_space<vmem>>, vector<1x16x16x128xbf16>,
    %cst_21 = arith.constant dense<0.000000e+00> : vector<128xf32>
    %32 = vector.multi_reduction <add>, %28, %cst_21 [0, 1] : vector<16x16x128xf32> to vector<128xf32>
    %33 = arith.mulf %28, %28 : vector<16x16x128xf32>
    %cst_22 = arith.constant dense<0.000000e+00> : vector<128xf32>
    %34 = vector.multi_reduction <add>, %33, %cst_22 [0, 1] : vector<16x16x128xf32> to vector<128xf32>
    %35 = vector.shape_cast %32 : vector<128xf32> to vector<1x128xf32>
    %36 = vector.shape_cast %34 : vector<128xf32> to vector<1x128xf32>
    %cst_23 = arith.constant 0.000000e+00 : f32
    %37 = vector.broadcast %cst_23 : f32 to vector<6x128xf32>
    %38 = tpu.concatenate %35, %36, %37 in 0 : vector<1x128xf32>, vector<1x128xf32>, vector<6x128xf32> -> vector<8x128xf32>
    %c0_24 = arith.constant 0 : index
    %c0_25 = arith.constant 0 : index
    %c0_26 = arith.constant 0 : index
    %c0_27 = arith.constant 0 : index
    %39 = vector.load %arg6[%c0_24, %c0_25, %c0_26, %c0_27] : memref<1x1x8x128xf32, #tpu.memory_space<vmem>>, vector<1x1x8x128xf32>
    %40 = vector.shape_cast %39 : vector<1x1x8x128xf32> to vector<8x128xf32>
    %41 = vector.shape_cast %38 : vector<8x128xf32> to vector<1x1x8x128xf32>
    tpu.vector_store %arg6[%c0_24, %c0_25, %c0_26, %c0_27], %41 {strides = array<i32>} : memref<1x1x8x128xf32, #tpu.memory_space<vmem>>, vector<1x1x8x128xf32>,
    return
  }
  func.func @transform_0(%arg0: i32, %arg1: i32, %arg2: i32) -> (i32, i32, i32, i32) {
    %c0_i32 = arith.constant 0 : i32
    %c0_i32_0 = arith.constant 0 : i32
    %c0_i32_1 = arith.constant 0 : i32
    %c0_i32_2 = arith.constant 0 : i32
    return %arg0, %c0_i32, %c0_i32_0, %c0_i32_1 : i32, i32, i32, i32
  }
  func.func @transform_1(%arg0: i32, %arg1: i32, %arg2: i32) -> (i32, i32, i32) {
    %c0_i32 = arith.constant 0 : i32
    %c0_i32_0 = arith.constant 0 : i32
    %c0_i32_1 = arith.constant 0 : i32
    return %c0_i32, %c0_i32_0, %arg1 : i32, i32, i32
  }
  func.func @transform_2(%arg0: i32, %arg1: i32, %arg2: i32) -> (i32, i32, i32, i32) {
    %c0_i32 = arith.constant 0 : i32
    %c0_i32_0 = arith.constant 0 : i32
    return %arg0, %arg2, %c0_i32, %arg1 : i32, i32, i32, i32
  }
  func.func @transform_3(%arg0: i32, %arg1: i32, %arg2: i32) -> (i32, i32, i32, i32) {
    %c0_i32 = arith.constant 0 : i32
    %c0_i32_0 = arith.constant 0 : i32
    return %arg0, %arg2, %c0_i32, %arg1 : i32, i32, i32, i32
  }
}

module attributes {stable_mosaic.version = 11 : i64} {
  func.func @bn_lrelu_kernel(%arg0: i32, %arg1: i32, %arg2: memref<1x16x16x128xbf16, #tpu.memory_space<vmem>>, %arg3: memref<1x128xf32, #tpu.memory_space<vmem>>, %arg4: memref<1x128xf32, #tpu.memory_space<vmem>>, %arg5: memref<1x16x16x128xf32, #tpu.memory_space<vmem>>) attributes {dimension_semantics = [#tpu.dimension_semantics<parallel>, #tpu.dimension_semantics<parallel>], iteration_bounds = array<i64: 2, 1>, scalar_prefetch = 0 : i64, scratch_operands = 0 : i64, tpu.core_type = #tpu.core_type<tc>, window_params = [{transform_indices = @transform_0, window_bounds = array<i64: 1, 16, 16, 128>}, {pipeline_mode = #tpu.pipeline_mode<synchronous>, transform_indices = @transform_1, window_bounds = array<i64: 1, 128>}, {pipeline_mode = #tpu.pipeline_mode<synchronous>, transform_indices = @transform_2, window_bounds = array<i64: 1, 128>}, {transform_indices = @transform_3, window_bounds = array<i64: 1, 16, 16, 128>}]} {
    %c0 = arith.constant 0 : index
    %c0_0 = arith.constant 0 : index
    %0 = vector.load %arg3[%c0, %c0_0] : memref<1x128xf32, #tpu.memory_space<vmem>>, vector<1x128xf32>
    %1 = vector.shape_cast %0 : vector<1x128xf32> to vector<1x1x1x128xf32>
    %c0_1 = arith.constant 0 : index
    %c0_2 = arith.constant 0 : index
    %2 = vector.load %arg4[%c0_1, %c0_2] : memref<1x128xf32, #tpu.memory_space<vmem>>, vector<1x128xf32>
    %3 = vector.shape_cast %2 : vector<1x128xf32> to vector<1x1x1x128xf32>
    %c0_3 = arith.constant 0 : index
    %c0_4 = arith.constant 0 : index
    %c0_5 = arith.constant 0 : index
    %c0_6 = arith.constant 0 : index
    %4 = vector.load %arg2[%c0_3, %c0_4, %c0_5, %c0_6] : memref<1x16x16x128xbf16, #tpu.memory_space<vmem>>, vector<1x16x16x128xbf16>
    %5 = arith.extf %4 : vector<1x16x16x128xbf16> to vector<1x16x16x128xf32>
    %6 = vector.broadcast %1 : vector<1x1x1x128xf32> to vector<1x16x16x128xf32>
    %7 = arith.mulf %5, %6 : vector<1x16x16x128xf32>
    %8 = vector.broadcast %3 : vector<1x1x1x128xf32> to vector<1x16x16x128xf32>
    %9 = arith.addf %7, %8 : vector<1x16x16x128xf32>
    %cst = arith.constant 0.000000e+00 : f32
    %10 = vector.broadcast %cst : f32 to vector<1x16x16x128xf32>
    %11 = arith.cmpf ogt, %9, %10 : vector<1x16x16x128xf32>
    %cst_7 = arith.constant 0.00999999977 : f32
    %12 = vector.broadcast %cst_7 : f32 to vector<1x16x16x128xf32>
    %13 = arith.mulf %12, %9 : vector<1x16x16x128xf32>
    %14 = arith.select %11, %9, %13 : vector<1x16x16x128xi1>, vector<1x16x16x128xf32>
    %c0_8 = arith.constant 0 : index
    %c0_9 = arith.constant 0 : index
    %c0_10 = arith.constant 0 : index
    %c0_11 = arith.constant 0 : index
    %15 = vector.load %arg5[%c0_8, %c0_9, %c0_10, %c0_11] : memref<1x16x16x128xf32, #tpu.memory_space<vmem>>, vector<1x16x16x128xf32>
    tpu.vector_store %arg5[%c0_8, %c0_9, %c0_10, %c0_11], %14 {strides = array<i32>} : memref<1x16x16x128xf32, #tpu.memory_space<vmem>>, vector<1x16x16x128xf32>,
    return
  }
  func.func @transform_0(%arg0: i32, %arg1: i32) -> (i32, i32, i32, i32) {
    %c0_i32 = arith.constant 0 : i32
    %c0_i32_0 = arith.constant 0 : i32
    %c0_i32_1 = arith.constant 0 : i32
    return %arg0, %arg1, %c0_i32, %c0_i32_0 : i32, i32, i32, i32
  }
  func.func @transform_1(%arg0: i32, %arg1: i32) -> (i32, i32) {
    %c0_i32 = arith.constant 0 : i32
    %c0_i32_0 = arith.constant 0 : i32
    %c0_i32_1 = arith.constant 0 : i32
    return %c0_i32, %c0_i32_0 : i32, i32
  }
  func.func @transform_2(%arg0: i32, %arg1: i32) -> (i32, i32) {
    %c0_i32 = arith.constant 0 : i32
    %c0_i32_0 = arith.constant 0 : i32
    %c0_i32_1 = arith.constant 0 : i32
    return %c0_i32, %c0_i32_0 : i32, i32
  }
  func.func @transform_3(%arg0: i32, %arg1: i32) -> (i32, i32, i32, i32) {
    %c0_i32 = arith.constant 0 : i32
    %c0_i32_0 = arith.constant 0 : i32
    %c0_i32_1 = arith.constant 0 : i32
    return %arg0, %arg1, %c0_i32, %c0_i32_0 : i32, i32, i32, i32
  }
}

</mosaic_0001>

<llo_original>
// kernel: basic_conv_forward.3
$region0: #{basic_conv_forward.3}
  #allocation0 [shape = 'u32[]', space=smem, size = 0x4, offset = 0x4, fixed_abs, tag = 'smem constant byte address 0x4 - core index']
  #allocation1 [shape = 'u32[144,128]{1,0:T(1,128)}', space=vmem, size = 0x12000, scoped, tag = 'internal scratch']
  %s0 = inlined_call_operand.vmem [shape: bf16[2,16,16,128], index: 0, kind: input, shape index: {}]
  %s1 = inlined_call_operand.vmem [shape: f32[1,128], index: 1, kind: input, shape index: {}]
  %s2 = inlined_call_operand.vmem [shape: f32[1,128], index: 2, kind: input, shape index: {}]
  %s3 = inlined_call_operand.vmem [shape: f32[2,16,16,128], index: 3, kind: output, shape index: {}]
  %s4 = sld [smem:[#allocation0]]
  $region45: #{basic_conv_forward.3} parent=0
    _
  %s6 = ssub.s32 1, %s4
  %s7 = scalar_select 0, %s6, %s4
  loop: start=0, step=1, limit=4
  $region2: #{basic_conv_forward.3} parent=0 // loop_pre_header
    _
  $region3: #{basic_conv_forward.3} parent=0 // loop_header
    %s9 = sphi 0, %s13
    %p10 = scmp.ge.s32.totalorder %s9, 4
    %s16 = sphi 0, %s28
    %s17 = sphi 0, %s24
    %s18 = sphi 0, %s16
    %s19 = sphi 0, %s17
    %s20 = sphi 0, %s18
    %s21 = sphi 0, %s19
    %s33 = sphi 0, %s35
    %s36 = sphi 0, %s33
    %s37 = sphi 0, %s36
    %s53 = sphi 0, %s37
    %s57 = sphi 0, %s57
    %s59 = sphi 0, %s57
    %s60 = sphi 0, %s59
    %s74 = sphi 0, %s60
    %s78 = sphi 0, %s78
    %s80 = sphi 0, %s78
    %s81 = sphi 0, %s80
    %s95 = sphi 0, %s81
    %s103 = sphi 0, %s105
    %s106 = sphi 0, %s103
    %s107 = sphi 0, %s106
    %s123 = sphi 0, %s107
  $region4: #{basic_conv_forward.3} parent=0 // loop_header_branch
    %12 = sbr.rel (%p10) target = $region8
  $region5: #{basic_conv_forward.3} parent=0 // loop_body
    %s14 = ssub.s32 %s9, 1
    %s15 = ssub.s32 %s9, 2
    %s22 = sadd.s32 1, %s17
    %p23 = scmp.ge.s32.totalorder %s22, 1
    %s24 = scalar_select %p23, 0, %s22
    %s25 = sadd.s32 1, %s16
    %s26 = scalar_select %p23, %s25, %s16
    %p27 = scmp.ge.s32.totalorder %s26, 2
    %s28 = scalar_select %p27, 0, %s26
    %s29 = ssub.s32 %s16, %s28
    %s30 = ssub.s32 %s17, %s24
    %s31 = sor.u32 %s29, %s30
    %p32 = scmp.eq.s32.totalorder %s31, 0
    %s34 = sadd.s32 %s33, 1
    %s35 = scalar_select %p32, %s33, %s34
    %p38 = pneg %p32
    %p39 = scmp.eq.s32.totalorder %s9, 1
    %p40 = por %p38, %p39
    %p41 = scmp.ne.s32.totalorder %s33, %s36
    %p42 = scmp.eq.s32.totalorder %s9, 0
    %p43 = por %p41, %p42
    %p44 = scmp.ne.s32.totalorder %s33, %s36
    %p45 = scmp.eq.s32.totalorder %s14, 1
    %p46 = por %p44, %p45
    %p47 = scmp.ne.s32.totalorder %s36, %s37
    %p48 = scmp.eq.s32.totalorder %s14, 0
    %p49 = por %p47, %p48
    %p50 = scmp.ne.s32.totalorder %s36, %s37
    %p51 = scmp.eq.s32.totalorder %s15, 1
    %p52 = por %p50, %p51
    %p54 = scmp.ne.s32.totalorder %s37, %s53
    %p55 = scmp.eq.s32.totalorder %s15, 0
    %p56 = por %p54, %p55
    %s58 = sadd.s32 %s57, 1
    %p61 = scmp.eq.s32.totalorder %s9, 1
    %p62 = scmp.ne.s32.totalorder %s57, %s59
    %p63 = scmp.eq.s32.totalorder %s9, 0
    %p64 = por %p62, %p63
    %p65 = scmp.ne.s32.totalorder %s57, %s59
    %p66 = scmp.eq.s32.totalorder %s14, 1
    %p67 = por %p65, %p66
    %p68 = scmp.ne.s32.totalorder %s59, %s60
    %p69 = scmp.eq.s32.totalorder %s14, 0
    %p70 = por %p68, %p69
    %p71 = scmp.ne.s32.totalorder %s59, %s60
    %p72 = scmp.eq.s32.totalorder %s15, 1
    %p73 = por %p71, %p72
    %p75 = scmp.ne.s32.totalorder %s60, %s74
    %p76 = scmp.eq.s32.totalorder %s15, 0
    %p77 = por %p75, %p76
    %s79 = sadd.s32 %s78, 1
    %p82 = scmp.eq.s32.totalorder %s9, 1
    %p83 = scmp.ne.s32.totalorder %s78, %s80
    %p84 = scmp.eq.s32.totalorder %s9, 0
    %p85 = por %p83, %p84
    %p86 = scmp.ne.s32.totalorder %s78, %s80
    %p87 = scmp.eq.s32.totalorder %s14, 1
    %p88 = por %p86, %p87
    %p89 = scmp.ne.s32.totalorder %s80, %s81
    %p90 = scmp.eq.s32.totalorder %s14, 0
    %p91 = por %p89, %p90
    %p92 = scmp.ne.s32.totalorder %s80, %s81
    %p93 = scmp.eq.s32.totalorder %s15, 1
    %p94 = por %p92, %p93
    %p96 = scmp.ne.s32.totalorder %s81, %s95
    %p97 = scmp.eq.s32.totalorder %s15, 0
    %p98 = por %p96, %p97
    %s99 = ssub.s32 %s16, %s28
    %s100 = ssub.s32 %s17, %s24
    %s101 = sor.u32 %s99, %s100
    %p102 = scmp.eq.s32.totalorder %s101, 0
    %s104 = sadd.s32 %s103, 1
    %s105 = scalar_select %p102, %s103, %s104
    %p108 = pneg %p102
    %p109 = scmp.eq.s32.totalorder %s9, 1
    %p110 = por %p108, %p109
    %p111 = scmp.ne.s32.totalorder %s103, %s106
    %p112 = scmp.eq.s32.totalorder %s9, 0
    %p113 = por %p111, %p112
    %p114 = scmp.ne.s32.totalorder %s103, %s106
    %p115 = scmp.eq.s32.totalorder %s14, 1
    %p116 = por %p114, %p115
    %p117 = scmp.ne.s32.totalorder %s106, %s107
    %p118 = scmp.eq.s32.totalorder %s14, 0
    %p119 = por %p117, %p118
    %p120 = scmp.ne.s32.totalorder %s106, %s107
    %p121 = scmp.eq.s32.totalorder %s15, 1
    %p122 = por %p120, %p121
    %p124 = scmp.ne.s32.totalorder %s107, %s123
    %p125 = scmp.eq.s32.totalorder %s15, 0
    %p126 = por %p124, %p125
    %p127 = scmp.le.s32.totalorder 1, %s9
    %p128 = scmp.lt.s32.totalorder %s9, 3
    %p129 = pnand %p127, %p128
    %p130 = pneg %p129
    // Predicated region
    $region9: #{basic_conv_forward.3} parent=5 // pred_check
      _
    $region10: #{basic_conv_forward.3} parent=5 // pred_check_branch
      %132 = sbr.rel (%p129) target = $region12
    $region11: #{basic_conv_forward.3} parent=5 // pred_region
      %s133 = ssub.s32 %s9, 1
      // Predicated region
      $region13: #{basic_conv_forward.3} parent=11 // pred_check
        %p134 = pneg %p70
      $region14: #{basic_conv_forward.3} parent=11 // pred_check_branch
        %136 = sbr.rel (%p134) target = $region16
      $region15: #{basic_conv_forward.3} parent=11 // pred_region
        _
      $region16: #{basic_conv_forward.3} parent=11 // pred_fallthru
        _
      // Predicated region
      $region17: #{basic_conv_forward.3} parent=11 // pred_check
        %p137 = pneg %p91
      $region18: #{basic_conv_forward.3} parent=11 // pred_check_branch
        %139 = sbr.rel (%p137) target = $region20
      $region19: #{basic_conv_forward.3} parent=11 // pred_region
        _
      $region20: #{basic_conv_forward.3} parent=11 // pred_fallthru
        _
    $region12: #{basic_conv_forward.3} parent=5 // pred_fallthru
      _
    %p140 = scmp.lt.s32.totalorder %s9, 2
    // Predicated region
    $region21: #{basic_conv_forward.3} parent=5 // pred_check
      %p141 = pneg %p140
    $region22: #{basic_conv_forward.3} parent=5 // pred_check_branch
      %143 = sbr.rel (%p141) target = $region24
    $region23: #{basic_conv_forward.3} parent=5 // pred_region
      // Predicated region
      $region25: #{basic_conv_forward.3} parent=23 // pred_check
        %p144 = pneg %p43
      $region26: #{basic_conv_forward.3} parent=23 // pred_check_branch
        %146 = sbr.rel (%p144) target = $region28
      $region27: #{basic_conv_forward.3} parent=23 // pred_region
        %s147 = smul.u32 16, %s17
        %p148 = scmp.lt.s32.totalorder %s16, 1
        %s149 = scalar_select %p148, %s16, 1
        %p150 = scmp.lt.s32.totalorder %s147, 15
        %s151 = scalar_select %p150, %s147, 15
        %s152 = smul.addr %s151, 2
        %s153 = smul.addr %s149, 32
        %s154 = sadd.s32 %s152, %s153
        %s155 = smul.addr %s154, 4
        %s156 = scalar_lea.vmem %s0, %s155
        %s157 = smul.u32 16, %s17
      $region28: #{basic_conv_forward.3} parent=23 // pred_fallthru
        _
    $region24: #{basic_conv_forward.3} parent=5 // pred_fallthru
      _
    %p158 = scmp.le.s32.totalorder 1, %s9
    %p159 = scmp.lt.s32.totalorder %s9, 3
    %p160 = pnand %p158, %p159
    %p161 = pneg %p160
    // Predicated region
    $region29: #{basic_conv_forward.3} parent=5 // pred_check
      _
    $region30: #{basic_conv_forward.3} parent=5 // pred_check_branch
      %163 = sbr.rel (%p160) target = $region32
    $region31: #{basic_conv_forward.3} parent=5 // pred_region
      %s164 = ssub.s32 %s9, 1
      %s165 = smul.u32 16, %s19
      %p166 = scmp.lt.s32.totalorder %s18, 1
      %s167 = scalar_select %p166, %s18, 1
      %p168 = scmp.lt.s32.totalorder %s165, 15
      %s169 = scalar_select %p168, %s165, 15
      %s170 = smul.addr %s169, 2
      %s171 = smul.addr %s167, 32
      %s172 = sadd.s32 %s170, %s171
      %s173 = smul.addr %s172, 4
      %s174 = scalar_lea.vmem %s0, %s173
      %p175 = pneg %p49
      %p176 = pneg %p46
      %p177 = pneg %p70
      %p178 = pneg %p67
      %p179 = pneg %p91
      %p180 = pneg %p88
      %p181 = pneg %p119
      %p182 = pneg %p116
      %s183 = smul.u32 16, %s19
      %p184 = scmp.lt.s32.totalorder %s18, 1
      %s185 = scalar_select %p184, %s18, 1
      %p186 = scmp.lt.s32.totalorder %s183, 15
      %s187 = scalar_select %p186, %s183, 15
      %s188 = smul.addr %s187, 2
      %s189 = smul.addr %s185, 32
      %s190 = sadd.s32 %s188, %s189
      %s191 = smul.addr %s190, 8
      %s192 = scalar_lea.vmem %s3, %s191
      %s193 = smul.u32 16, %s19
      %p194 = scmp.lt.s32.totalorder %s18, 1
      %s195 = scalar_select %p194, %s18, 1
      %p196 = scmp.lt.s32.totalorder %s193, 15
      %s197 = scalar_select %p196, %s193, 15
      %s198 = smul.addr %s197, 2
      %s199 = smul.addr %s195, 32
      %s200 = sadd.s32 %s198, %s199
      %s201 = smul.addr %s200, 4
      %s202 = scalar_lea.vmem %s0, %s201
      %s203 = smul.u32 16, %s19
      %s204 = smul.u32 16, %s19
      %p205 = scmp.lt.s32.totalorder %s18, 1
      %s206 = scalar_select %p205, %s18, 1
      %p207 = scmp.lt.s32.totalorder %s204, 15
      %s208 = scalar_select %p207, %s204, 15
      %s209 = smul.addr %s208, 2
      %s210 = smul.addr %s206, 32
      %s211 = sadd.s32 %s209, %s210
      %s212 = smul.addr %s211, 8
      %s213 = scalar_lea.vmem %s3, %s212
      %s214 = smul.u32 16, %s19
      %v215 = vld [vmem:[%s1] sm:$0x1]
      %v216 = vld [vmem:[%s2] sm:$0x1]
      %v217 = vld [vmem:[%s202] sm:$0xf]
      %v218 = vld [vmem:[%s202 + $0x4] sm:$0xf]
      %v219 = vld [vmem:[%s202 + $0x8] sm:$0xf]
      %v220 = vld [vmem:[%s202 + $0xc] sm:$0xf]
      %v221 = vld [vmem:[%s202 + $0x10] sm:$0xf]
      %v222 = vld [vmem:[%s202 + $0x14] sm:$0xf]
      %v223 = vld [vmem:[%s202 + $0x18] sm:$0xf]
      %v224 = vld [vmem:[%s202 + $0x1c] sm:$0xf]
      %v225 = vld [vmem:[%s202 + $0x20] sm:$0xf]
      %v226 = vld [vmem:[%s202 + $0x24] sm:$0xf]
      %v227 = vld [vmem:[%s202 + $0x28] sm:$0xf]
      %v228 = vld [vmem:[%s202 + $0x2c] sm:$0xf]
      %v229 = vld [vmem:[%s202 + $0x30] sm:$0xf]
      %v230 = vld [vmem:[%s202 + $0x34] sm:$0xf]
      %v231 = vld [vmem:[%s202 + $0x38] sm:$0xf]
      %v232 = vld [vmem:[%s202 + $0x3c] sm:$0xf]
      %v233 = vld [vmem:[%s202 + $0x40] sm:$0xf]
      %v234 = vld [vmem:[%s202 + $0x44] sm:$0xf]
      %v235 = vld [vmem:[%s202 + $0x48] sm:$0xf]
      %v236 = vld [vmem:[%s202 + $0x4c] sm:$0xf]
      %v237 = vld [vmem:[%s202 + $0x50] sm:$0xf]
      %v238 = vld [vmem:[%s202 + $0x54] sm:$0xf]
      %v239 = vld [vmem:[%s202 + $0x58] sm:$0xf]
      %v240 = vld [vmem:[%s202 + $0x5c] sm:$0xf]
      %v241 = vld [vmem:[%s202 + $0x60] sm:$0xf]
      %v242 = vld [vmem:[%s202 + $0x64] sm:$0xf]
      %v243 = vld [vmem:[%s202 + $0x68] sm:$0xf]
      %v244 = vld [vmem:[%s202 + $0x6c] sm:$0xf]
      %v245 = vld [vmem:[%s202 + $0x70] sm:$0xf]
      %v246 = vld [vmem:[%s202 + $0x74] sm:$0xf]
      %v247 = vld [vmem:[%s202 + $0x78] sm:$0xf]
      %v248 = vld [vmem:[%s202 + $0x7c] sm:$0xf]
      %v249 = vunpack.c.l.bf16 %v217
      %v250 = vunpack.c.l.bf16 %v218
      %v251 = vunpack.c.l.bf16 %v219
      %v252 = vunpack.c.l.bf16 %v220
      %v253 = vunpack.c.l.bf16 %v221
      %v254 = vunpack.c.l.bf16 %v222
      %v255 = vunpack.c.l.bf16 %v223
      %v256 = vunpack.c.l.bf16 %v224
      %v257 = vunpack.c.l.bf16 %v225
      %v258 = vunpack.c.l.bf16 %v226
      %v259 = vunpack.c.l.bf16 %v227
      %v260 = vunpack.c.l.bf16 %v228
      %v261 = vunpack.c.l.bf16 %v229
      %v262 = vunpack.c.l.bf16 %v230
      %v263 = vunpack.c.l.bf16 %v231
      %v264 = vunpack.c.l.bf16 %v232
      %v265 = vunpack.c.l.bf16 %v233
      %v266 = vunpack.c.l.bf16 %v234
      %v267 = vunpack.c.l.bf16 %v235
      %v268 = vunpack.c.l.bf16 %v236
      %v269 = vunpack.c.l.bf16 %v237
      %v270 = vunpack.c.l.bf16 %v238
      %v271 = vunpack.c.l.bf16 %v239
      %v272 = vunpack.c.l.bf16 %v240
      %v273 = vunpack.c.l.bf16 %v241
      %v274 = vunpack.c.l.bf16 %v242
      %v275 = vunpack.c.l.bf16 %v243
      %v276 = vunpack.c.l.bf16 %v244
      %v277 = vunpack.c.l.bf16 %v245
      %v278 = vunpack.c.l.bf16 %v246
      %v279 = vunpack.c.l.bf16 %v247
      %v280 = vunpack.c.l.bf16 %v248
      %v282 = vlaneseq
      %v283 = vshrl.u32 %v282, 7
      %v284 = vsub.s32 0, %v283
      %v285 = vrot.slane %v215, %v284
      %v287 = vmul.f32 %v249, %v285
      %v288 = vmul.f32 %v250, %v285
      %v289 = vmul.f32 %v251, %v285
      %v290 = vmul.f32 %v252, %v285
      %v291 = vmul.f32 %v253, %v285
      %v292 = vmul.f32 %v254, %v285
      %v293 = vmul.f32 %v255, %v285
      %v294 = vmul.f32 %v256, %v285
      %v295 = vmul.f32 %v257, %v285
      %v296 = vmul.f32 %v258, %v285
      %v297 = vmul.f32 %v259, %v285
      %v298 = vmul.f32 %v260, %v285
      %v299 = vmul.f32 %v261, %v285
      %v300 = vmul.f32 %v262, %v285
      %v301 = vmul.f32 %v263, %v285
      %v302 = vmul.f32 %v264, %v285
      %v303 = vmul.f32 %v265, %v285
      %v304 = vmul.f32 %v266, %v285
      %v305 = vmul.f32 %v267, %v285
      %v306 = vmul.f32 %v268, %v285
      %v307 = vmul.f32 %v269, %v285
      %v308 = vmul.f32 %v270, %v285
      %v309 = vmul.f32 %v271, %v285
      %v310 = vmul.f32 %v272, %v285
      %v311 = vmul.f32 %v273, %v285
      %v312 = vmul.f32 %v274, %v285
      %v313 = vmul.f32 %v275, %v285
      %v314 = vmul.f32 %v276, %v285
      %v315 = vmul.f32 %v277, %v285
      %v316 = vmul.f32 %v278, %v285
      %v317 = vmul.f32 %v279, %v285
      %v318 = vmul.f32 %v280, %v285
      %v320 = vlaneseq
      %v321 = vshrl.u32 %v320, 7
      %v322 = vsub.s32 0, %v321
      %v323 = vrot.slane %v216, %v322
      %v325 = vadd.f32 %v287, %v323
      %v326 = vadd.f32 %v288, %v323
      %v327 = vadd.f32 %v289, %v323
      %v328 = vadd.f32 %v290, %v323
      %v329 = vadd.f32 %v291, %v323
      %v330 = vadd.f32 %v292, %v323
      %v331 = vadd.f32 %v293, %v323
      %v332 = vadd.f32 %v294, %v323
      %v333 = vadd.f32 %v295, %v323
      %v334 = vadd.f32 %v296, %v323
      %v335 = vadd.f32 %v297, %v323
      %v336 = vadd.f32 %v298, %v323
      %v337 = vadd.f32 %v299, %v323
      %v338 = vadd.f32 %v300, %v323
      %v339 = vadd.f32 %v301, %v323
      %v340 = vadd.f32 %v302, %v323
      %v341 = vadd.f32 %v303, %v323
      %v342 = vadd.f32 %v304, %v323
      %v343 = vadd.f32 %v305, %v323
      %v344 = vadd.f32 %v306, %v323
      %v345 = vadd.f32 %v307, %v323
      %v346 = vadd.f32 %v308, %v323
      %v347 = vadd.f32 %v309, %v323
      %v348 = vadd.f32 %v310, %v323
      %v349 = vadd.f32 %v311, %v323
      %v350 = vadd.f32 %v312, %v323
      %v351 = vadd.f32 %v313, %v323
      %v352 = vadd.f32 %v314, %v323
      %v353 = vadd.f32 %v315, %v323
      %v354 = vadd.f32 %v316, %v323
      %v355 = vadd.f32 %v317, %v323
      %v356 = vadd.f32 %v318, %v323
      %vm357 = vcmp.gt.f32.partialorder %v325, 0.0
      %vm358 = vcmp.gt.f32.partialorder %v326, 0.0
      %vm359 = vcmp.gt.f32.partialorder %v327, 0.0
      %vm360 = vcmp.gt.f32.partialorder %v328, 0.0
      %vm361 = vcmp.gt.f32.partialorder %v329, 0.0
      %vm362 = vcmp.gt.f32.partialorder %v330, 0.0
      %vm363 = vcmp.gt.f32.partialorder %v331, 0.0
      %vm364 = vcmp.gt.f32.partialorder %v332, 0.0
      %vm365 = vcmp.gt.f32.partialorder %v333, 0.0
      %vm366 = vcmp.gt.f32.partialorder %v334, 0.0
      %vm367 = vcmp.gt.f32.partialorder %v335, 0.0
      %vm368 = vcmp.gt.f32.partialorder %v336, 0.0
      %vm369 = vcmp.gt.f32.partialorder %v337, 0.0
      %vm370 = vcmp.gt.f32.partialorder %v338, 0.0
      %vm371 = vcmp.gt.f32.partialorder %v339, 0.0
      %vm372 = vcmp.gt.f32.partialorder %v340, 0.0
      %vm373 = vcmp.gt.f32.partialorder %v341, 0.0
      %vm374 = vcmp.gt.f32.partialorder %v342, 0.0
      %vm375 = vcmp.gt.f32.partialorder %v343, 0.0
      %vm376 = vcmp.gt.f32.partialorder %v344, 0.0
      %vm377 = vcmp.gt.f32.partialorder %v345, 0.0
      %vm378 = vcmp.gt.f32.partialorder %v346, 0.0
      %vm379 = vcmp.gt.f32.partialorder %v347, 0.0
      %vm380 = vcmp.gt.f32.partialorder %v348, 0.0
      %vm381 = vcmp.gt.f32.partialorder %v349, 0.0
      %vm382 = vcmp.gt.f32.partialorder %v350, 0.0
      %vm383 = vcmp.gt.f32.partialorder %v351, 0.0
      %vm384 = vcmp.gt.f32.partialorder %v352, 0.0
      %vm385 = vcmp.gt.f32.partialorder %v353, 0.0
      %vm386 = vcmp.gt.f32.partialorder %v354, 0.0
      %vm387 = vcmp.gt.f32.partialorder %v355, 0.0
      %vm388 = vcmp.gt.f32.partialorder %v356, 0.0
      %v389 = vmul.f32 %v325, 0.01
      %v390 = vmul.f32 %v326, 0.01
      %v391 = vmul.f32 %v327, 0.01
      %v392 = vmul.f32 %v328, 0.01
      %v393 = vmul.f32 %v329, 0.01
      %v394 = vmul.f32 %v330, 0.01
      %v395 = vmul.f32 %v331, 0.01
      %v396 = vmul.f32 %v332, 0.01
      %v397 = vmul.f32 %v333, 0.01
      %v398 = vmul.f32 %v334, 0.01
      %v399 = vmul.f32 %v335, 0.01
      %v400 = vmul.f32 %v336, 0.01
      %v401 = vmul.f32 %v337, 0.01
      %v402 = vmul.f32 %v338, 0.01
      %v403 = vmul.f32 %v339, 0.01
      %v404 = vmul.f32 %v340, 0.01
      %v405 = vmul.f32 %v341, 0.01
      %v406 = vmul.f32 %v342, 0.01
      %v407 = vmul.f32 %v343, 0.01
      %v408 = vmul.f32 %v344, 0.01
      %v409 = vmul.f32 %v345, 0.01
      %v410 = vmul.f32 %v346, 0.01
      %v411 = vmul.f32 %v347, 0.01
      %v412 = vmul.f32 %v348, 0.01
      %v413 = vmul.f32 %v349, 0.01
      %v414 = vmul.f32 %v350, 0.01
      %v415 = vmul.f32 %v351, 0.01
      %v416 = vmul.f32 %v352, 0.01
      %v417 = vmul.f32 %v353, 0.01
      %v418 = vmul.f32 %v354, 0.01
      %v419 = vmul.f32 %v355, 0.01
      %v420 = vmul.f32 %v356, 0.01
      %v421 = vsel %vm357, %v325, %v389
      %v422 = vsel %vm358, %v326, %v390
      %v423 = vsel %vm359, %v327, %v391
      %v424 = vsel %vm360, %v328, %v392
      %v425 = vsel %vm361, %v329, %v393
      %v426 = vsel %vm362, %v330, %v394
      %v427 = vsel %vm363, %v331, %v395
      %v428 = vsel %vm364, %v332, %v396
      %v429 = vsel %vm365, %v333, %v397
      %v430 = vsel %vm366, %v334, %v398
      %v431 = vsel %vm367, %v335, %v399
      %v432 = vsel %vm368, %v336, %v400
      %v433 = vsel %vm369, %v337, %v401
      %v434 = vsel %vm370, %v338, %v402
      %v435 = vsel %vm371, %v339, %v403
      %v436 = vsel %vm372, %v340, %v404
      %v437 = vsel %vm373, %v341, %v405
      %v438 = vsel %vm374, %v342, %v406
      %v439 = vsel %vm375, %v343, %v407
      %v440 = vsel %vm376, %v344, %v408
      %v441 = vsel %vm377, %v345, %v409
      %v442 = vsel %vm378, %v346, %v410
      %v443 = vsel %vm379, %v347, %v411
      %v444 = vsel %vm380, %v348, %v412
      %v445 = vsel %vm381, %v349, %v413
      %v446 = vsel %vm382, %v350, %v414
      %v447 = vsel %vm383, %v351, %v415
      %v448 = vsel %vm384, %v352, %v416
      %v449 = vsel %vm385, %v353, %v417
      %v450 = vsel %vm386, %v354, %v418
      %v451 = vsel %vm387, %v355, %v419
      %v452 = vsel %vm388, %v356, %v420
      %453 = vst [vmem:[%s213] sm:$0xff] %v421
      %454 = vst [vmem:[%s213 + $0x8] sm:$0xff] %v422
      %455 = vst [vmem:[%s213 + $0x10] sm:$0xff] %v423
      %456 = vst [vmem:[%s213 + $0x18] sm:$0xff] %v424
      %457 = vst [vmem:[%s213 + $0x20] sm:$0xff] %v425
      %458 = vst [vmem:[%s213 + $0x28] sm:$0xff] %v426
      %459 = vst [vmem:[%s213 + $0x30] sm:$0xff] %v427
      %460 = vst [vmem:[%s213 + $0x38] sm:$0xff] %v428
      %461 = vst [vmem:[%s213 + $0x40] sm:$0xff] %v429
      %462 = vst [vmem:[%s213 + $0x48] sm:$0xff] %v430
      %463 = vst [vmem:[%s213 + $0x50] sm:$0xff] %v431
      %464 = vst [vmem:[%s213 + $0x58] sm:$0xff] %v432
      %465 = vst [vmem:[%s213 + $0x60] sm:$0xff] %v433
      %466 = vst [vmem:[%s213 + $0x68] sm:$0xff] %v434
      %467 = vst [vmem:[%s213 + $0x70] sm:$0xff] %v435
      %468 = vst [vmem:[%s213 + $0x78] sm:$0xff] %v436
      %469 = vst [vmem:[%s213 + $0x80] sm:$0xff] %v437
      %470 = vst [vmem:[%s213 + $0x88] sm:$0xff] %v438
      %471 = vst [vmem:[%s213 + $0x90] sm:$0xff] %v439
      %472 = vst [vmem:[%s213 + $0x98] sm:$0xff] %v440
      %473 = vst [vmem:[%s213 + $0xa0] sm:$0xff] %v441
      %474 = vst [vmem:[%s213 + $0xa8] sm:$0xff] %v442
      %475 = vst [vmem:[%s213 + $0xb0] sm:$0xff] %v443
      %476 = vst [vmem:[%s213 + $0xb8] sm:$0xff] %v444
      %477 = vst [vmem:[%s213 + $0xc0] sm:$0xff] %v445
      %478 = vst [vmem:[%s213 + $0xc8] sm:$0xff] %v446
      %479 = vst [vmem:[%s213 + $0xd0] sm:$0xff] %v447
      %480 = vst [vmem:[%s213 + $0xd8] sm:$0xff] %v448
      %481 = vst [vmem:[%s213 + $0xe0] sm:$0xff] %v449
      %482 = vst [vmem:[%s213 + $0xe8] sm:$0xff] %v450
      %483 = vst [vmem:[%s213 + $0xf0] sm:$0xff] %v451
      %484 = vst [vmem:[%s213 + $0xf8] sm:$0xff] %v452
      %s485 = smul.u32 16, %s19
      %p486 = scmp.lt.s32.totalorder %s18, 1
      %s487 = scalar_select %p486, %s18, 1
      %p488 = scmp.lt.s32.totalorder %s485, 15
      %s489 = scalar_select %p488, %s485, 15
      %s490 = smul.addr %s489, 2
      %s491 = smul.addr %s487, 32
      %s492 = sadd.s32 %s490, %s491
      %s493 = smul.addr %s492, 8
      %s494 = scalar_lea.vmem %s3, %s493
      // Predicated region
      $region33: #{basic_conv_forward.3} parent=31 // pred_check
        %p495 = pneg %p116
      $region34: #{basic_conv_forward.3} parent=31 // pred_check_branch
        %497 = sbr.rel (%p495) target = $region36
      $region35: #{basic_conv_forward.3} parent=31 // pred_region
        %s498 = smul.u32 16, %s19
      $region36: #{basic_conv_forward.3} parent=31 // pred_fallthru
        _
    $region32: #{basic_conv_forward.3} parent=5 // pred_fallthru
      _
    %p499 = scmp.le.s32.totalorder 2, %s9
    // Predicated region
    $region37: #{basic_conv_forward.3} parent=5 // pred_check
      %p500 = pneg %p499
    $region38: #{basic_conv_forward.3} parent=5 // pred_check_branch
      %502 = sbr.rel (%p500) target = $region40
    $region39: #{basic_conv_forward.3} parent=5 // pred_region
      %s503 = ssub.s32 %s9, 2
      // Predicated region
      $region41: #{basic_conv_forward.3} parent=39 // pred_check
        %p504 = pneg %p122
      $region42: #{basic_conv_forward.3} parent=39 // pred_check_branch
        %506 = sbr.rel (%p504) target = $region44
      $region43: #{basic_conv_forward.3} parent=39 // pred_region
        %s507 = smul.u32 16, %s21
        %p508 = scmp.lt.s32.totalorder %s20, 1
        %s509 = scalar_select %p508, %s20, 1
        %p510 = scmp.lt.s32.totalorder %s507, 15
        %s511 = scalar_select %p510, %s507, 15
        %s512 = smul.addr %s511, 2
        %s513 = smul.addr %s509, 32
        %s514 = sadd.s32 %s512, %s513
        %s515 = smul.addr %s514, 8
        %s516 = scalar_lea.vmem %s3, %s515
      $region44: #{basic_conv_forward.3} parent=39 // pred_fallthru
        _
    $region40: #{basic_conv_forward.3} parent=5 // pred_fallthru
      _
  $region6: #{basic_conv_forward.3} parent=0 // loop_footer
    %s13 = sadd.s32 1, %s9
  $region7: #{basic_conv_forward.3} parent=0 // loop_footer_branch
    %8 = sbr.rel target = $region3
  $region8: #{basic_conv_forward.3} parent=0 // loop_exit
    _

// kernel: basic_conv_forward.2
$region0: #{basic_conv_forward.2}
  #allocation0 [shape = 'u32[]', space=smem, size = 0x4, offset = 0x4, fixed_abs, tag = 'smem constant byte address 0x4 - core index']
  #allocation1 [shape = 'u32[144,128]{1,0:T(1,128)}', space=vmem, size = 0x12000, scoped, tag = 'internal scratch']
  %s0 = inlined_call_operand.vmem [shape: bf16[2,18,16,12], index: 0, kind: input, shape index: {}]
  %s1 = inlined_call_operand.vmem [shape: bf16[3,12,128], index: 1, kind: input, shape index: {}]
  %s2 = inlined_call_operand.vmem [shape: bf16[2,16,16,128], index: 2, kind: output, shape index: {0}]
  %s3 = inlined_call_operand.vmem [shape: f32[2,1,8,128], index: 3, kind: output, shape index: {1}]
  %4 = xla_tuple %s2, %s3
  %s5 = sld [smem:[#allocation0]]
  $region49: #{basic_conv_forward.2} parent=0
    _
  %s7 = ssub.s32 1, %s5
  %s8 = scalar_select 0, %s7, %s5
  loop: start=0, step=1, limit=4
  $region2: #{basic_conv_forward.2} parent=0 // loop_pre_header
    _
  $region3: #{basic_conv_forward.2} parent=0 // loop_header
    %s10 = sphi 0, %s14
    %p11 = scmp.ge.s32.totalorder %s10, 4
    %s17 = sphi 0, %s36
    %s18 = sphi 0, %s32
    %s19 = sphi 0, %s28
    %s20 = sphi 0, %s17
    %s21 = sphi 0, %s18
    %s22 = sphi 0, %s19
    %s23 = sphi 0, %s20
    %s24 = sphi 0, %s21
    %s25 = sphi 0, %s22
    %s39 = sphi 0, %s41
    %s42 = sphi 0, %s39
    %s43 = sphi 0, %s42
    %s59 = sphi 0, %s43
    %s65 = sphi 0, %s67
    %s68 = sphi 0, %s65
    %s69 = sphi 0, %s68
    %s85 = sphi 0, %s69
    %s95 = sphi 0, %s97
    %s98 = sphi 0, %s95
    %s99 = sphi 0, %s98
    %s115 = sphi 0, %s99
    %s125 = sphi 0, %s127
    %s128 = sphi 0, %s125
    %s129 = sphi 0, %s128
    %s145 = sphi 0, %s129
  $region4: #{basic_conv_forward.2} parent=0 // loop_header_branch
    %13 = sbr.rel (%p11) target = $region8
  $region5: #{basic_conv_forward.2} parent=0 // loop_body
    %s15 = ssub.s32 %s10, 1
    %s16 = ssub.s32 %s10, 2
    %s26 = sadd.s32 1, %s19
    %p27 = scmp.ge.s32.totalorder %s26, 1
    %s28 = scalar_select %p27, 0, %s26
    %s29 = sadd.s32 1, %s18
    %s30 = scalar_select %p27, %s29, %s18
    %p31 = scmp.ge.s32.totalorder %s30, 1
    %s32 = scalar_select %p31, 0, %s30
    %s33 = sadd.s32 1, %s17
    %s34 = scalar_select %p31, %s33, %s17
    %p35 = scmp.ge.s32.totalorder %s34, 2
    %s36 = scalar_select %p35, 0, %s34
    %s37 = ssub.s32 %s17, %s36
    %p38 = scmp.eq.s32.totalorder %s37, 0
    %s40 = sadd.s32 %s39, 1
    %s41 = scalar_select %p38, %s39, %s40
    %p44 = pneg %p38
    %p45 = scmp.eq.s32.totalorder %s10, 1
    %p46 = por %p44, %p45
    %p47 = scmp.ne.s32.totalorder %s39, %s42
    %p48 = scmp.eq.s32.totalorder %s10, 0
    %p49 = por %p47, %p48
    %p50 = scmp.ne.s32.totalorder %s39, %s42
    %p51 = scmp.eq.s32.totalorder %s15, 1
    %p52 = por %p50, %p51
    %p53 = scmp.ne.s32.totalorder %s42, %s43
    %p54 = scmp.eq.s32.totalorder %s15, 0
    %p55 = por %p53, %p54
    %p56 = scmp.ne.s32.totalorder %s42, %s43
    %p57 = scmp.eq.s32.totalorder %s16, 1
    %p58 = por %p56, %p57
    %p60 = scmp.ne.s32.totalorder %s43, %s59
    %p61 = scmp.eq.s32.totalorder %s16, 0
    %p62 = por %p60, %p61
    %s63 = ssub.s32 %s18, %s32
    %p64 = scmp.eq.s32.totalorder %s63, 0
    %s66 = sadd.s32 %s65, 1
    %s67 = scalar_select %p64, %s65, %s66
    %p70 = pneg %p64
    %p71 = scmp.eq.s32.totalorder %s10, 1
    %p72 = por %p70, %p71
    %p73 = scmp.ne.s32.totalorder %s65, %s68
    %p74 = scmp.eq.s32.totalorder %s10, 0
    %p75 = por %p73, %p74
    %p76 = scmp.ne.s32.totalorder %s65, %s68
    %p77 = scmp.eq.s32.totalorder %s15, 1
    %p78 = por %p76, %p77
    %p79 = scmp.ne.s32.totalorder %s68, %s69
    %p80 = scmp.eq.s32.totalorder %s15, 0
    %p81 = por %p79, %p80
    %p82 = scmp.ne.s32.totalorder %s68, %s69
    %p83 = scmp.eq.s32.totalorder %s16, 1
    %p84 = por %p82, %p83
    %p86 = scmp.ne.s32.totalorder %s69, %s85
    %p87 = scmp.eq.s32.totalorder %s16, 0
    %p88 = por %p86, %p87
    %s89 = ssub.s32 %s17, %s36
    %s90 = ssub.s32 %s19, %s28
    %s91 = sor.u32 %s89, %s90
    %s92 = ssub.s32 %s18, %s32
    %s93 = sor.u32 %s91, %s92
    %p94 = scmp.eq.s32.totalorder %s93, 0
    %s96 = sadd.s32 %s95, 1
    %s97 = scalar_select %p94, %s95, %s96
    %p100 = pneg %p94
    %p101 = scmp.eq.s32.totalorder %s10, 1
    %p102 = por %p100, %p101
    %p103 = scmp.ne.s32.totalorder %s95, %s98
    %p104 = scmp.eq.s32.totalorder %s10, 0
    %p105 = por %p103, %p104
    %p106 = scmp.ne.s32.totalorder %s95, %s98
    %p107 = scmp.eq.s32.totalorder %s15, 1
    %p108 = por %p106, %p107
    %p109 = scmp.ne.s32.totalorder %s98, %s99
    %p110 = scmp.eq.s32.totalorder %s15, 0
    %p111 = por %p109, %p110
    %p112 = scmp.ne.s32.totalorder %s98, %s99
    %p113 = scmp.eq.s32.totalorder %s16, 1
    %p114 = por %p112, %p113
    %p116 = scmp.ne.s32.totalorder %s99, %s115
    %p117 = scmp.eq.s32.totalorder %s16, 0
    %p118 = por %p116, %p117
    %s119 = ssub.s32 %s17, %s36
    %s120 = ssub.s32 %s19, %s28
    %s121 = sor.u32 %s119, %s120
    %s122 = ssub.s32 %s18, %s32
    %s123 = sor.u32 %s121, %s122
    %p124 = scmp.eq.s32.totalorder %s123, 0
    %s126 = sadd.s32 %s125, 1
    %s127 = scalar_select %p124, %s125, %s126
    %p130 = pneg %p124
    %p131 = scmp.eq.s32.totalorder %s10, 1
    %p132 = por %p130, %p131
    %p133 = scmp.ne.s32.totalorder %s125, %s128
    %p134 = scmp.eq.s32.totalorder %s10, 0
    %p135 = por %p133, %p134
    %p136 = scmp.ne.s32.totalorder %s125, %s128
    %p137 = scmp.eq.s32.totalorder %s15, 1
    %p138 = por %p136, %p137
    %p139 = scmp.ne.s32.totalorder %s128, %s129
    %p140 = scmp.eq.s32.totalorder %s15, 0
    %p141 = por %p139, %p140
    %p142 = scmp.ne.s32.totalorder %s128, %s129
    %p143 = scmp.eq.s32.totalorder %s16, 1
    %p144 = por %p142, %p143
    %p146 = scmp.ne.s32.totalorder %s129, %s145
    %p147 = scmp.eq.s32.totalorder %s16, 0
    %p148 = por %p146, %p147
    %p149 = scmp.le.s32.totalorder 1, %s10
    %p150 = scmp.lt.s32.totalorder %s10, 3
    %p151 = pnand %p149, %p150
    %p152 = pneg %p151
    // Predicated region
    $region9: #{basic_conv_forward.2} parent=5 // pred_check
      _
    $region10: #{basic_conv_forward.2} parent=5 // pred_check_branch
      %154 = sbr.rel (%p151) target = $region12
    $region11: #{basic_conv_forward.2} parent=5 // pred_region
      %s155 = ssub.s32 %s10, 1
      // Predicated region
      $region13: #{basic_conv_forward.2} parent=11 // pred_check
        %p156 = pneg %p81
      $region14: #{basic_conv_forward.2} parent=11 // pred_check_branch
        %158 = sbr.rel (%p156) target = $region16
      $region15: #{basic_conv_forward.2} parent=11 // pred_region
        %p159 = scmp.lt.s32.totalorder %s21, 0
        %s160 = scalar_select %p159, %s21, 0
        %s161 = smul.addr %s160, 4
        %s162 = scalar_lea.vmem %s1, %s161
      $region16: #{basic_conv_forward.2} parent=11 // pred_fallthru
        _
    $region12: #{basic_conv_forward.2} parent=5 // pred_fallthru
      _
    %p163 = scmp.lt.s32.totalorder %s10, 2
    // Predicated region
    $region17: #{basic_conv_forward.2} parent=5 // pred_check
      %p164 = pneg %p163
    $region18: #{basic_conv_forward.2} parent=5 // pred_check_branch
      %166 = sbr.rel (%p164) target = $region20
    $region19: #{basic_conv_forward.2} parent=5 // pred_region
      // Predicated region
      $region21: #{basic_conv_forward.2} parent=19 // pred_check
        %p167 = pneg %p49
      $region22: #{basic_conv_forward.2} parent=19 // pred_check_branch
        %169 = sbr.rel (%p167) target = $region24
      $region23: #{basic_conv_forward.2} parent=19 // pred_region
        %p170 = scmp.lt.s32.totalorder %s17, 1
        %s171 = scalar_select %p170, %s17, 1
        %s172 = smul.addr %s171, 36
        %s173 = smul.addr %s172, 4
        %s174 = scalar_lea.vmem %s0, %s173
      $region24: #{basic_conv_forward.2} parent=19 // pred_fallthru
        _
    $region20: #{basic_conv_forward.2} parent=5 // pred_fallthru
      _
    %p175 = scmp.le.s32.totalorder 1, %s10
    %p176 = scmp.lt.s32.totalorder %s10, 3
    %p177 = pnand %p175, %p176
    %p178 = pneg %p177
    // Predicated region
    $region25: #{basic_conv_forward.2} parent=5 // pred_check
      _
    $region26: #{basic_conv_forward.2} parent=5 // pred_check_branch
      %180 = sbr.rel (%p177) target = $region28
    $region27: #{basic_conv_forward.2} parent=5 // pred_region
      %s181 = ssub.s32 %s10, 1
      %p182 = scmp.lt.s32.totalorder %s20, 1
      %s183 = scalar_select %p182, %s20, 1
      %s184 = smul.addr %s183, 36
      %s185 = smul.addr %s184, 4
      %s186 = scalar_lea.vmem %s0, %s185
      %p187 = pneg %p55
      %p188 = pneg %p52
      %p189 = scmp.lt.s32.totalorder %s21, 0
      %s190 = scalar_select %p189, %s21, 0
      %s191 = smul.addr %s190, 4
      %s192 = scalar_lea.vmem %s1, %s191
      %p193 = pneg %p81
      %p194 = pneg %p78
      %p195 = pneg %p111
      %p196 = pneg %p108
      %s197 = smul.u32 16, %s22
      %p198 = scmp.lt.s32.totalorder %s20, 1
      %s199 = scalar_select %p198, %s20, 1
      %p200 = scmp.lt.s32.totalorder %s197, 15
      %s201 = scalar_select %p200, %s197, 15
      %p202 = scmp.lt.s32.totalorder %s21, 0
      %s203 = scalar_select %p202, %s21, 0
      %s204 = smul.addr %s201, 2
      %s205 = sadd.s32 %s203, %s204
      %s206 = smul.addr %s199, 32
      %s207 = sadd.s32 %s205, %s206
      %s208 = smul.addr %s207, 4
      %s209 = scalar_lea.vmem %s2, %s208
      %p210 = pneg %p141
      %p211 = pneg %p138
      %p212 = scmp.lt.s32.totalorder %s20, 1
      %s213 = scalar_select %p212, %s20, 1
      %p214 = scmp.lt.s32.totalorder %s22, 0
      %s215 = scalar_select %p214, %s22, 0
      %p216 = scmp.lt.s32.totalorder %s21, 0
      %s217 = scalar_select %p216, %s21, 0
      %s218 = sadd.s32 %s217, %s215
      %s219 = sadd.s32 %s218, %s213
      %s220 = smul.addr %s219, 8
      %s221 = scalar_lea.vmem %s3, %s220
      %p222 = scmp.lt.s32.totalorder %s20, 1
      %s223 = scalar_select %p222, %s20, 1
      %s224 = smul.addr %s223, 36
      %s225 = smul.addr %s224, 4
      %s226 = scalar_lea.vmem %s0, %s225
      %p227 = scmp.lt.s32.totalorder %s21, 0
      %s228 = scalar_select %p227, %s21, 0
      %s229 = smul.addr %s228, 4
      %s230 = scalar_lea.vmem %s1, %s229
      %s231 = smul.u32 16, %s22
      %p232 = scmp.lt.s32.totalorder %s20, 1
      %s233 = scalar_select %p232, %s20, 1
      %p234 = scmp.lt.s32.totalorder %s231, 15
      %s235 = scalar_select %p234, %s231, 15
      %p236 = scmp.lt.s32.totalorder %s21, 0
      %s237 = scalar_select %p236, %s21, 0
      %s238 = smul.addr %s235, 2
      %s239 = sadd.s32 %s237, %s238
      %s240 = smul.addr %s233, 32
      %s241 = sadd.s32 %s239, %s240
      %s242 = smul.addr %s241, 4
      %s243 = scalar_lea.vmem %s2, %s242
      %s244 = smul.u32 16, %s22
      %p245 = scmp.lt.s32.totalorder %s20, 1
      %s246 = scalar_select %p245, %s20, 1
      %p247 = scmp.lt.s32.totalorder %s22, 0
      %s248 = scalar_select %p247, %s22, 0
      %p249 = scmp.lt.s32.totalorder %s21, 0
      %s250 = scalar_select %p249, %s21, 0
      %s251 = sadd.s32 %s250, %s248
      %s252 = sadd.s32 %s251, %s246
      %s253 = smul.addr %s252, 8
      %s254 = scalar_lea.vmem %s3, %s253
      %s256 = smul.u32 %s22, 16
      %s257 = smul.u32 %s256, 2
      %s258 = smul.addr %s257, 4
      %s259 = scalar_lea.vmem %s226, %s258
      %v260 = vld [vmem:[%s259] sm:$0xf]
      %v261 = vld [vmem:[%s259 + $0x4] sm:$0xf]
      %v262 = vld [vmem:[%s259 + $0x8] sm:$0xf]
      %v263 = vld [vmem:[%s259 + $0xc] sm:$0xf]
      %v264 = vld [vmem:[%s259 + $0x10] sm:$0xf]
      %v265 = vld [vmem:[%s259 + $0x14] sm:$0xf]
      %v266 = vld [vmem:[%s259 + $0x18] sm:$0xf]
      %v267 = vld [vmem:[%s259 + $0x1c] sm:$0xf]
      %v268 = vld [vmem:[%s259 + $0x20] sm:$0xf]
      %v269 = vld [vmem:[%s259 + $0x24] sm:$0xf]
      %v270 = vld [vmem:[%s259 + $0x28] sm:$0xf]
      %v271 = vld [vmem:[%s259 + $0x2c] sm:$0xf]
      %v272 = vld [vmem:[%s259 + $0x30] sm:$0xf]
      %v273 = vld [vmem:[%s259 + $0x34] sm:$0xf]
      %v274 = vld [vmem:[%s259 + $0x38] sm:$0xf]
      %v275 = vld [vmem:[%s259 + $0x3c] sm:$0xf]
      %v276 = vld [vmem:[%s259 + $0x40] sm:$0xf]
      %v277 = vld [vmem:[%s259 + $0x44] sm:$0xf]
      %v278 = vld [vmem:[%s259 + $0x48] sm:$0xf]
      %v279 = vld [vmem:[%s259 + $0x4c] sm:$0xf]
      %v280 = vld [vmem:[%s259 + $0x50] sm:$0xf]
      %v281 = vld [vmem:[%s259 + $0x54] sm:$0xf]
      %v282 = vld [vmem:[%s259 + $0x58] sm:$0xf]
      %v283 = vld [vmem:[%s259 + $0x5c] sm:$0xf]
      %v284 = vld [vmem:[%s259 + $0x60] sm:$0xf]
      %v285 = vld [vmem:[%s259 + $0x64] sm:$0xf]
      %v286 = vld [vmem:[%s259 + $0x68] sm:$0xf]
      %v287 = vld [vmem:[%s259 + $0x6c] sm:$0xf]
      %v288 = vld [vmem:[%s259 + $0x70] sm:$0xf]
      %v289 = vld [vmem:[%s259 + $0x74] sm:$0xf]
      %v290 = vld [vmem:[%s259 + $0x78] sm:$0xf]
      %v291 = vld [vmem:[%s259 + $0x7c] sm:$0xf]
      %v292 = vld [vmem:[%s230] sm:$0xf]
      %v293 = vld [vmem:[%s230 + $0x4] sm:$0x3]
      %s294 = sadd.s32 %s256, 1
      %s295 = smul.u32 %s294, 2
      %s296 = smul.addr %s295, 4
      %s297 = scalar_lea.vmem %s226, %s296
      %v298 = vld [vmem:[%s297] sm:$0xf]
      %v299 = vld [vmem:[%s297 + $0x4] sm:$0xf]
      %v300 = vld [vmem:[%s297 + $0x8] sm:$0xf]
      %v301 = vld [vmem:[%s297 + $0xc] sm:$0xf]
      %v302 = vld [vmem:[%s297 + $0x10] sm:$0xf]
      %v303 = vld [vmem:[%s297 + $0x14] sm:$0xf]
      %v304 = vld [vmem:[%s297 + $0x18] sm:$0xf]
      %v305 = vld [vmem:[%s297 + $0x1c] sm:$0xf]
      %v306 = vld [vmem:[%s297 + $0x20] sm:$0xf]
      %v307 = vld [vmem:[%s297 + $0x24] sm:$0xf]
      %v308 = vld [vmem:[%s297 + $0x28] sm:$0xf]
      %v309 = vld [vmem:[%s297 + $0x2c] sm:$0xf]
      %v310 = vld [vmem:[%s297 + $0x30] sm:$0xf]
      %v311 = vld [vmem:[%s297 + $0x34] sm:$0xf]
      %v312 = vld [vmem:[%s297 + $0x38] sm:$0xf]
      %v313 = vld [vmem:[%s297 + $0x3c] sm:$0xf]
      %v314 = vld [vmem:[%s297 + $0x40] sm:$0xf]
      %v315 = vld [vmem:[%s297 + $0x44] sm:$0xf]
      %v316 = vld [vmem:[%s297 + $0x48] sm:$0xf]
      %v317 = vld [vmem:[%s297 + $0x4c] sm:$0xf]
      %v318 = vld [vmem:[%s297 + $0x50] sm:$0xf]
      %v319 = vld [vmem:[%s297 + $0x54] sm:$0xf]
      %v320 = vld [vmem:[%s297 + $0x58] sm:$0xf]
      %v321 = vld [vmem:[%s297 + $0x5c] sm:$0xf]
      %v322 = vld [vmem:[%s297 + $0x60] sm:$0xf]
      %v323 = vld [vmem:[%s297 + $0x64] sm:$0xf]
      %v324 = vld [vmem:[%s297 + $0x68] sm:$0xf]
      %v325 = vld [vmem:[%s297 + $0x6c] sm:$0xf]
      %v326 = vld [vmem:[%s297 + $0x70] sm:$0xf]
      %v327 = vld [vmem:[%s297 + $0x74] sm:$0xf]
      %v328 = vld [vmem:[%s297 + $0x78] sm:$0xf]
      %v329 = vld [vmem:[%s297 + $0x7c] sm:$0xf]
      %s330 = scalar_lea.vmem %s230, 8
      %v331 = vld [vmem:[%s330] sm:$0xf]
      %v332 = vld [vmem:[%s330 + $0x4] sm:$0x3]
      %v365 = vunpack.c.l.b16 %v298
      %v366 = vunpack.c.l.b16 %v299
      %v367 = vunpack.c.l.b16 %v300
      %v368 = vunpack.c.l.b16 %v301
      %v369 = vunpack.c.l.b16 %v302
      %v370 = vunpack.c.l.b16 %v303
      %v371 = vunpack.c.l.b16 %v304
      %v372 = vunpack.c.l.b16 %v305
      %v373 = vunpack.c.l.b16 %v306
      %v374 = vunpack.c.l.b16 %v307
      %v375 = vunpack.c.l.b16 %v308
      %v376 = vunpack.c.l.b16 %v309
      %v377 = vunpack.c.l.b16 %v310
      %v378 = vunpack.c.l.b16 %v311
      %v379 = vunpack.c.l.b16 %v312
      %v380 = vunpack.c.l.b16 %v313
      %v381 = vunpack.c.l.b16 %v314
      %v382 = vunpack.c.l.b16 %v315
      %v383 = vunpack.c.l.b16 %v316
      %v384 = vunpack.c.l.b16 %v317
      %v385 = vunpack.c.l.b16 %v318
      %v386 = vunpack.c.l.b16 %v319
      %v387 = vunpack.c.l.b16 %v320
      %v388 = vunpack.c.l.b16 %v321
      %v389 = vunpack.c.l.b16 %v322
      %v390 = vunpack.c.l.b16 %v323
      %v391 = vunpack.c.l.b16 %v324
      %v392 = vunpack.c.l.b16 %v325
      %v393 = vunpack.c.l.b16 %v326
      %v394 = vunpack.c.l.b16 %v327
      %v395 = vunpack.c.l.b16 %v328
      %v396 = vunpack.c.l.b16 %v329
      %v397 = vpack.c.b16 %v366, %v365
      %v398 = vpack.c.b16 %v368, %v367
      %v399 = vpack.c.b16 %v370, %v369
      %v400 = vpack.c.b16 %v372, %v371
      %v401 = vpack.c.b16 %v374, %v373
      %v402 = vpack.c.b16 %v376, %v375
      %v403 = vpack.c.b16 %v378, %v377
      %v404 = vpack.c.b16 %v380, %v379
      %v405 = vpack.c.b16 %v382, %v381
      %v406 = vpack.c.b16 %v384, %v383
      %v407 = vpack.c.b16 %v386, %v385
      %v408 = vpack.c.b16 %v388, %v387
      %v409 = vpack.c.b16 %v390, %v389
      %v410 = vpack.c.b16 %v392, %v391
      %v411 = vpack.c.b16 %v394, %v393
      %v412 = vpack.c.b16 %v396, %v395
      %v415 = vunpack.c.l.b16 %v331
      %v416 = vunpack.c.l.b16 %v332
      %v417 = vpack.c.b16 %v416, %v415
      %vm418 = vcmask 97280
      %v420 = vsel %vm418, %v397, 0
      %v423 = vsel %vm418, %v398, 0
      %v426 = vsel %vm418, %v399, 0
      %v429 = vsel %vm418, %v400, 0
      %v432 = vsel %vm418, %v401, 0
      %v435 = vsel %vm418, %v402, 0
      %v438 = vsel %vm418, %v403, 0
      %v441 = vsel %vm418, %v404, 0
      %v444 = vsel %vm418, %v405, 0
      %v447 = vsel %vm418, %v406, 0
      %v450 = vsel %vm418, %v407, 0
      %v453 = vsel %vm418, %v408, 0
      %v456 = vsel %vm418, %v409, 0
      %v459 = vsel %vm418, %v410, 0
      %v462 = vsel %vm418, %v411, 0
      %v465 = vsel %vm418, %v412, 0
      %vm467 = vcmask 1045504
      %v469 = vsel %vm467, %v417, 0
      %471 = vmatprep.subr.bf16.mxu0 0
      %472 = vmatpush1.bf16.msra.mxu0 0
      %473 = vmatprep.subr.bf16.mxu0 0
      %474 = vmatpush1.bf16.msra.mxu0 0
      %475 = vmatprep.subr.bf16.mxu0 0
      %476 = vmatpush1.bf16.msra.mxu0 0
      %477 = vmatprep.subr.bf16.mxu0 0
      %478 = vmatpush1.bf16.msra.mxu0 0
      %479 = vmatprep.subr.bf16.mxu0 0
      %480 = vmatpush1.bf16.msra.mxu0 0
      %481 = vmatprep.subr.bf16.mxu0 0
      %482 = vmatpush1.bf16.msra.mxu0 0
      %483 = vmatprep.subr.bf16.mxu0 0
      %484 = vmatpush1.bf16.msra.mxu0 0
      %485 = vmatprep.subr.bf16.mxu0 0
      %486 = vmatpush1.bf16.msra.mxu0 %v469
      %487 = vmatprep.subr.bf16.mxu0 0
      %488 = vmatpush2.bf16.msra.mxu0 0
      %489 = vmatprep.subr.bf16.mxu0 0
      %490 = vmatpush2.bf16.msra.mxu0 0
      %491 = vmatprep.subr.bf16.mxu0 0
      %492 = vmatpush2.bf16.msra.mxu0 0
      %493 = vmatprep.subr.bf16.mxu0 0
      %494 = vmatpush2.bf16.msra.mxu0 0
      %495 = vmatprep.subr.bf16.mxu0 0
      %496 = vmatpush2.bf16.msra.mxu0 0
      %497 = vmatprep.subr.bf16.mxu0 0
      %498 = vmatpush2.bf16.msra.mxu0 0
      %499 = vmatprep.subr.bf16.mxu0 0
      %500 = vmatpush2.bf16.msra.mxu0 0
      %501 = vmatprep.subr.bf16.mxu0 0
      %502 = vmatpush2.bf16.msra.mxu0 0
      %503 = vmatprep.mubr.bf16.mxu0 0
      %504 = vmatmul.mubr.bf16.gmra.mxu0 %v420
      %v505 = vpop.f32.mrf.mxu0
      %v506 = vadd.f32 0.0, %v505
      %v507 = vpop.f32.mrf.mxu0
      %v508 = vpop.f32.mrf.mxu0
      %v509 = vadd.f32 0.0, %v508
      %v510 = vpop.f32.mrf.mxu0
      %511 = vmatprep.mubr.bf16.mxu0 0
      %512 = vmatmul.mubr.bf16.gmra.mxu0 %v423
      %v513 = vpop.f32.mrf.mxu0
      %v514 = vadd.f32 0.0, %v513
      %v515 = vpop.f32.mrf.mxu0
      %v516 = vpop.f32.mrf.mxu0
      %v517 = vadd.f32 0.0, %v516
      %v518 = vpop.f32.mrf.mxu0
      %519 = vmatprep.mubr.bf16.mxu0 0
      %520 = vmatmul.mubr.bf16.gmra.mxu0 %v426
      %v521 = vpop.f32.mrf.mxu0
      %v522 = vadd.f32 0.0, %v521
      %v523 = vpop.f32.mrf.mxu0
      %v524 = vpop.f32.mrf.mxu0
      %v525 = vadd.f32 0.0, %v524
      %v526 = vpop.f32.mrf.mxu0
      %527 = vmatprep.mubr.bf16.mxu0 0
      %528 = vmatmul.mubr.bf16.gmra.mxu0 %v429
      %v529 = vpop.f32.mrf.mxu0
      %v530 = vadd.f32 0.0, %v529
      %v531 = vpop.f32.mrf.mxu0
      %v532 = vpop.f32.mrf.mxu0
      %v533 = vadd.f32 0.0, %v532
      %v534 = vpop.f32.mrf.mxu0
      %535 = vmatprep.mubr.bf16.mxu0 0
      %536 = vmatmul.mubr.bf16.gmra.mxu0 %v432
      %v537 = vpop.f32.mrf.mxu0
      %v538 = vadd.f32 0.0, %v537
      %v539 = vpop.f32.mrf.mxu0
      %v540 = vpop.f32.mrf.mxu0
      %v541 = vadd.f32 0.0, %v540
      %v542 = vpop.f32.mrf.mxu0
      %543 = vmatprep.mubr.bf16.mxu0 0
      %544 = vmatmul.mubr.bf16.gmra.mxu0 %v435
      %v545 = vpop.f32.mrf.mxu0
      %v546 = vadd.f32 0.0, %v545
      %v547 = vpop.f32.mrf.mxu0
      %v548 = vpop.f32.mrf.mxu0
      %v549 = vadd.f32 0.0, %v548
      %v550 = vpop.f32.mrf.mxu0
      %551 = vmatprep.mubr.bf16.mxu0 0
      %552 = vmatmul.mubr.bf16.gmra.mxu0 %v438
      %v553 = vpop.f32.mrf.mxu0
      %v554 = vadd.f32 0.0, %v553
      %v555 = vpop.f32.mrf.mxu0
      %v556 = vpop.f32.mrf.mxu0
      %v557 = vadd.f32 0.0, %v556
      %v558 = vpop.f32.mrf.mxu0
      %559 = vmatprep.mubr.bf16.mxu0 0
      %560 = vmatmul.mubr.bf16.gmra.mxu0 %v441
      %v561 = vpop.f32.mrf.mxu0
      %v562 = vadd.f32 0.0, %v561
      %v563 = vpop.f32.mrf.mxu0
      %v564 = vpop.f32.mrf.mxu0
      %v565 = vadd.f32 0.0, %v564
      %v566 = vpop.f32.mrf.mxu0
      %567 = vmatprep.mubr.bf16.mxu0 0
      %568 = vmatmul.mubr.bf16.gmra.mxu0 %v444
      %v569 = vpop.f32.mrf.mxu0
      %v570 = vadd.f32 0.0, %v569
      %v571 = vpop.f32.mrf.mxu0
      %v572 = vpop.f32.mrf.mxu0
      %v573 = vadd.f32 0.0, %v572
      %v574 = vpop.f32.mrf.mxu0
      %575 = vmatprep.mubr.bf16.mxu0 0
      %576 = vmatmul.mubr.bf16.gmra.mxu0 %v447
      %v577 = vpop.f32.mrf.mxu0
      %v578 = vadd.f32 0.0, %v577
      %v579 = vpop.f32.mrf.mxu0
      %v580 = vpop.f32.mrf.mxu0
      %v581 = vadd.f32 0.0, %v580
      %v582 = vpop.f32.mrf.mxu0
      %583 = vmatprep.mubr.bf16.mxu0 0
      %584 = vmatmul.mubr.bf16.gmra.mxu0 %v450
      %v585 = vpop.f32.mrf.mxu0
      %v586 = vadd.f32 0.0, %v585
      %v587 = vpop.f32.mrf.mxu0
      %v588 = vpop.f32.mrf.mxu0
      %v589 = vadd.f32 0.0, %v588
      %v590 = vpop.f32.mrf.mxu0
      %591 = vmatprep.mubr.bf16.mxu0 0
      %592 = vmatmul.mubr.bf16.gmra.mxu0 %v453
      %v593 = vpop.f32.mrf.mxu0
      %v594 = vadd.f32 0.0, %v593
      %v595 = vpop.f32.mrf.mxu0
      %v596 = vpop.f32.mrf.mxu0
      %v597 = vadd.f32 0.0, %v596
      %v598 = vpop.f32.mrf.mxu0
      %599 = vmatprep.mubr.bf16.mxu0 0
      %600 = vmatmul.mubr.bf16.gmra.mxu0 %v456
      %v601 = vpop.f32.mrf.mxu0
      %v602 = vadd.f32 0.0, %v601
      %v603 = vpop.f32.mrf.mxu0
      %v604 = vpop.f32.mrf.mxu0
      %v605 = vadd.f32 0.0, %v604
      %v606 = vpop.f32.mrf.mxu0
      %607 = vmatprep.mubr.bf16.mxu0 0
      %608 = vmatmul.mubr.bf16.gmra.mxu0 %v459
      %v609 = vpop.f32.mrf.mxu0
      %v610 = vadd.f32 0.0, %v609
      %v611 = vpop.f32.mrf.mxu0
      %v612 = vpop.f32.mrf.mxu0
      %v613 = vadd.f32 0.0, %v612
      %v614 = vpop.f32.mrf.mxu0
      %615 = vmatprep.mubr.bf16.mxu0 0
      %616 = vmatmul.mubr.bf16.gmra.mxu0 %v462
      %v617 = vpop.f32.mrf.mxu0
      %v618 = vadd.f32 0.0, %v617
      %v619 = vpop.f32.mrf.mxu0
      %v620 = vpop.f32.mrf.mxu0
      %v621 = vadd.f32 0.0, %v620
      %v622 = vpop.f32.mrf.mxu0
      %623 = vmatprep.mubr.bf16.mxu0 0
      %624 = vmatmul.mubr.bf16.gmra.mxu0 %v465
      %v625 = vpop.f32.mrf.mxu0
      %v626 = vadd.f32 0.0, %v625
      %v627 = vpop.f32.mrf.mxu0
      %v628 = vpop.f32.mrf.mxu0
      %v629 = vadd.f32 0.0, %v628
      %v630 = vpop.f32.mrf.mxu0
      %631 = vdwg.mxu0
      %v664 = vunpack.c.l.b16 %v260
      %v665 = vunpack.c.l.b16 %v261
      %v666 = vunpack.c.l.b16 %v262
      %v667 = vunpack.c.l.b16 %v263
      %v668 = vunpack.c.l.b16 %v264
      %v669 = vunpack.c.l.b16 %v265
      %v670 = vunpack.c.l.b16 %v266
      %v671 = vunpack.c.l.b16 %v267
      %v672 = vunpack.c.l.b16 %v268
      %v673 = vunpack.c.l.b16 %v269
      %v674 = vunpack.c.l.b16 %v270
      %v675 = vunpack.c.l.b16 %v271
      %v676 = vunpack.c.l.b16 %v272
      %v677 = vunpack.c.l.b16 %v273
      %v678 = vunpack.c.l.b16 %v274
      %v679 = vunpack.c.l.b16 %v275
      %v680 = vunpack.c.l.b16 %v276
      %v681 = vunpack.c.l.b16 %v277
      %v682 = vunpack.c.l.b16 %v278
      %v683 = vunpack.c.l.b16 %v279
      %v684 = vunpack.c.l.b16 %v280
      %v685 = vunpack.c.l.b16 %v281
      %v686 = vunpack.c.l.b16 %v282
      %v687 = vunpack.c.l.b16 %v283
      %v688 = vunpack.c.l.b16 %v284
      %v689 = vunpack.c.l.b16 %v285
      %v690 = vunpack.c.l.b16 %v286
      %v691 = vunpack.c.l.b16 %v287
      %v692 = vunpack.c.l.b16 %v288
      %v693 = vunpack.c.l.b16 %v289
      %v694 = vunpack.c.l.b16 %v290
      %v695 = vunpack.c.l.b16 %v291
      %v696 = vpack.c.b16 %v665, %v664
      %v697 = vpack.c.b16 %v667, %v666
      %v698 = vpack.c.b16 %v669, %v668
      %v699 = vpack.c.b16 %v671, %v670
      %v700 = vpack.c.b16 %v673, %v672
      %v701 = vpack.c.b16 %v675, %v674
      %v702 = vpack.c.b16 %v677, %v676
      %v703 = vpack.c.b16 %v679, %v678
      %v704 = vpack.c.b16 %v681, %v680
      %v705 = vpack.c.b16 %v683, %v682
      %v706 = vpack.c.b16 %v685, %v684
      %v707 = vpack.c.b16 %v687, %v686
      %v708 = vpack.c.b16 %v689, %v688
      %v709 = vpack.c.b16 %v691, %v690
      %v710 = vpack.c.b16 %v693, %v692
      %v711 = vpack.c.b16 %v695, %v694
      %v714 = vunpack.c.l.b16 %v292
      %v715 = vunpack.c.l.b16 %v293
      %v716 = vpack.c.b16 %v715, %v714
      %v718 = vsel %vm418, %v696, 0
      %v721 = vsel %vm418, %v697, 0
      %v724 = vsel %vm418, %v698, 0
      %v727 = vsel %vm418, %v699, 0
      %v730 = vsel %vm418, %v700, 0
      %v733 = vsel %vm418, %v701, 0
      %v736 = vsel %vm418, %v702, 0
      %v739 = vsel %vm418, %v703, 0
      %v742 = vsel %vm418, %v704, 0
      %v745 = vsel %vm418, %v705, 0
      %v748 = vsel %vm418, %v706, 0
      %v751 = vsel %vm418, %v707, 0
      %v754 = vsel %vm418, %v708, 0
      %v757 = vsel %vm418, %v709, 0
      %v760 = vsel %vm418, %v710, 0
      %v763 = vsel %vm418, %v711, 0
      %v766 = vsel %vm467, %v716, 0
      %768 = vmatprep.subr.bf16.mxu0 0
      %769 = vmatpush1.bf16.msra.mxu0 0
      %770 = vmatprep.subr.bf16.mxu0 0
      %771 = vmatpush1.bf16.msra.mxu0 0
      %772 = vmatprep.subr.bf16.mxu0 0
      %773 = vmatpush1.bf16.msra.mxu0 0
      %774 = vmatprep.subr.bf16.mxu0 0
      %775 = vmatpush1.bf16.msra.mxu0 0
      %776 = vmatprep.subr.bf16.mxu0 0
      %777 = vmatpush1.bf16.msra.mxu0 0
      %778 = vmatprep.subr.bf16.mxu0 0
      %779 = vmatpush1.bf16.msra.mxu0 0
      %780 = vmatprep.subr.bf16.mxu0 0
      %781 = vmatpush1.bf16.msra.mxu0 0
      %782 = vmatprep.subr.bf16.mxu0 0
      %783 = vmatpush1.bf16.msra.mxu0 %v766
      %784 = vmatprep.subr.bf16.mxu0 0
      %785 = vmatpush2.bf16.msra.mxu0 0
      %786 = vmatprep.subr.bf16.mxu0 0
      %787 = vmatpush2.bf16.msra.mxu0 0
      %788 = vmatprep.subr.bf16.mxu0 0
      %789 = vmatpush2.bf16.msra.mxu0 0
      %790 = vmatprep.subr.bf16.mxu0 0
      %791 = vmatpush2.bf16.msra.mxu0 0
      %792 = vmatprep.subr.bf16.mxu0 0
      %793 = vmatpush2.bf16.msra.mxu0 0
      %794 = vmatprep.subr.bf16.mxu0 0
      %795 = vmatpush2.bf16.msra.mxu0 0
      %796 = vmatprep.subr.bf16.mxu0 0
      %797 = vmatpush2.bf16.msra.mxu0 0
      %798 = vmatprep.subr.bf16.mxu0 0
      %799 = vmatpush2.bf16.msra.mxu0 0
      %800 = vmatprep.mubr.bf16.mxu0 0
      %801 = vmatmul.mubr.bf16.gmra.mxu0 %v718
      %v802 = vpop.f32.mrf.mxu0
      %v803 = vadd.f32 %v506, %v802
      %v804 = vpop.f32.mrf.mxu0
      %v805 = vpop.f32.mrf.mxu0
      %v806 = vadd.f32 %v509, %v805
      %v807 = vpop.f32.mrf.mxu0
      %808 = vmatprep.mubr.bf16.mxu0 0
      %809 = vmatmul.mubr.bf16.gmra.mxu0 %v721
      %v810 = vpop.f32.mrf.mxu0
      %v811 = vadd.f32 %v514, %v810
      %v812 = vpop.f32.mrf.mxu0
      %v813 = vpop.f32.mrf.mxu0
      %v814 = vadd.f32 %v517, %v813
      %v815 = vpop.f32.mrf.mxu0
      %816 = vmatprep.mubr.bf16.mxu0 0
      %817 = vmatmul.mubr.bf16.gmra.mxu0 %v724
      %v818 = vpop.f32.mrf.mxu0
      %v819 = vadd.f32 %v522, %v818
      %v820 = vpop.f32.mrf.mxu0
      %v821 = vpop.f32.mrf.mxu0
      %v822 = vadd.f32 %v525, %v821
      %v823 = vpop.f32.mrf.mxu0
      %824 = vmatprep.mubr.bf16.mxu0 0
      %825 = vmatmul.mubr.bf16.gmra.mxu0 %v727
      %v826 = vpop.f32.mrf.mxu0
      %v827 = vadd.f32 %v530, %v826
      %v828 = vpop.f32.mrf.mxu0
      %v829 = vpop.f32.mrf.mxu0
      %v830 = vadd.f32 %v533, %v829
      %v831 = vpop.f32.mrf.mxu0
      %832 = vmatprep.mubr.bf16.mxu0 0
      %833 = vmatmul.mubr.bf16.gmra.mxu0 %v730
      %v834 = vpop.f32.mrf.mxu0
      %v835 = vadd.f32 %v538, %v834
      %v836 = vpop.f32.mrf.mxu0
      %v837 = vpop.f32.mrf.mxu0
      %v838 = vadd.f32 %v541, %v837
      %v839 = vpop.f32.mrf.mxu0
      %840 = vmatprep.mubr.bf16.mxu0 0
      %841 = vmatmul.mubr.bf16.gmra.mxu0 %v733
      %v842 = vpop.f32.mrf.mxu0
      %v843 = vadd.f32 %v546, %v842
      %v844 = vpop.f32.mrf.mxu0
      %v845 = vpop.f32.mrf.mxu0
      %v846 = vadd.f32 %v549, %v845
      %v847 = vpop.f32.mrf.mxu0
      %848 = vmatprep.mubr.bf16.mxu0 0
      %849 = vmatmul.mubr.bf16.gmra.mxu0 %v736
      %v850 = vpop.f32.mrf.mxu0
      %v851 = vadd.f32 %v554, %v850
      %v852 = vpop.f32.mrf.mxu0
      %v853 = vpop.f32.mrf.mxu0
      %v854 = vadd.f32 %v557, %v853
      %v855 = vpop.f32.mrf.mxu0
      %856 = vmatprep.mubr.bf16.mxu0 0
      %857 = vmatmul.mubr.bf16.gmra.mxu0 %v739
      %v858 = vpop.f32.mrf.mxu0
      %v859 = vadd.f32 %v562, %v858
      %v860 = vpop.f32.mrf.mxu0
      %v861 = vpop.f32.mrf.mxu0
      %v862 = vadd.f32 %v565, %v861
      %v863 = vpop.f32.mrf.mxu0
      %864 = vmatprep.mubr.bf16.mxu0 0
      %865 = vmatmul.mubr.bf16.gmra.mxu0 %v742
      %v866 = vpop.f32.mrf.mxu0
      %v867 = vadd.f32 %v570, %v866
      %v868 = vpop.f32.mrf.mxu0
      %v869 = vpop.f32.mrf.mxu0
      %v870 = vadd.f32 %v573, %v869
      %v871 = vpop.f32.mrf.mxu0
      %872 = vmatprep.mubr.bf16.mxu0 0
      %873 = vmatmul.mubr.bf16.gmra.mxu0 %v745
      %v874 = vpop.f32.mrf.mxu0
      %v875 = vadd.f32 %v578, %v874
      %v876 = vpop.f32.mrf.mxu0
      %v877 = vpop.f32.mrf.mxu0
      %v878 = vadd.f32 %v581, %v877
      %v879 = vpop.f32.mrf.mxu0
      %880 = vmatprep.mubr.bf16.mxu0 0
      %881 = vmatmul.mubr.bf16.gmra.mxu0 %v748
      %v882 = vpop.f32.mrf.mxu0
      %v883 = vadd.f32 %v586, %v882
      %v884 = vpop.f32.mrf.mxu0
      %v885 = vpop.f32.mrf.mxu0
      %v886 = vadd.f32 %v589, %v885
      %v887 = vpop.f32.mrf.mxu0
      %888 = vmatprep.mubr.bf16.mxu0 0
      %889 = vmatmul.mubr.bf16.gmra.mxu0 %v751
      %v890 = vpop.f32.mrf.mxu0
      %v891 = vadd.f32 %v594, %v890
      %v892 = vpop.f32.mrf.mxu0
      %v893 = vpop.f32.mrf.mxu0
      %v894 = vadd.f32 %v597, %v893
      %v895 = vpop.f32.mrf.mxu0
      %896 = vmatprep.mubr.bf16.mxu0 0
      %897 = vmatmul.mubr.bf16.gmra.mxu0 %v754
      %v898 = vpop.f32.mrf.mxu0
      %v899 = vadd.f32 %v602, %v898
      %v900 = vpop.f32.mrf.mxu0
      %v901 = vpop.f32.mrf.mxu0
      %v902 = vadd.f32 %v605, %v901
      %v903 = vpop.f32.mrf.mxu0
      %904 = vmatprep.mubr.bf16.mxu0 0
      %905 = vmatmul.mubr.bf16.gmra.mxu0 %v757
      %v906 = vpop.f32.mrf.mxu0
      %v907 = vadd.f32 %v610, %v906
      %v908 = vpop.f32.mrf.mxu0
      %v909 = vpop.f32.mrf.mxu0
      %v910 = vadd.f32 %v613, %v909
      %v911 = vpop.f32.mrf.mxu0
      %912 = vmatprep.mubr.bf16.mxu0 0
      %913 = vmatmul.mubr.bf16.gmra.mxu0 %v760
      %v914 = vpop.f32.mrf.mxu0
      %v915 = vadd.f32 %v618, %v914
      %v916 = vpop.f32.mrf.mxu0
      %v917 = vpop.f32.mrf.mxu0
      %v918 = vadd.f32 %v621, %v917
      %v919 = vpop.f32.mrf.mxu0
      %920 = vmatprep.mubr.bf16.mxu0 0
      %921 = vmatmul.mubr.bf16.gmra.mxu0 %v763
      %v922 = vpop.f32.mrf.mxu0
      %v923 = vadd.f32 %v626, %v922
      %v924 = vpop.f32.mrf.mxu0
      %v925 = vpop.f32.mrf.mxu0
      %v926 = vadd.f32 %v629, %v925
      %v927 = vpop.f32.mrf.mxu0
      %928 = vdwg.mxu0
      %s929 = sadd.s32 %s256, 2
      %s930 = smul.u32 %s929, 2
      %s931 = smul.addr %s930, 4
      %s932 = scalar_lea.vmem %s226, %s931
      %v933 = vld [vmem:[%s932] sm:$0xf]
      %v934 = vld [vmem:[%s932 + $0x4] sm:$0xf]
      %v935 = vld [vmem:[%s932 + $0x8] sm:$0xf]
      %v936 = vld [vmem:[%s932 + $0xc] sm:$0xf]
      %v937 = vld [vmem:[%s932 + $0x10] sm:$0xf]
      %v938 = vld [vmem:[%s932 + $0x14] sm:$0xf]
      %v939 = vld [vmem:[%s932 + $0x18] sm:$0xf]
      %v940 = vld [vmem:[%s932 + $0x1c] sm:$0xf]
      %v941 = vld [vmem:[%s932 + $0x20] sm:$0xf]
      %v942 = vld [vmem:[%s932 + $0x24] sm:$0xf]
      %v943 = vld [vmem:[%s932 + $0x28] sm:$0xf]
      %v944 = vld [vmem:[%s932 + $0x2c] sm:$0xf]
      %v945 = vld [vmem:[%s932 + $0x30] sm:$0xf]
      %v946 = vld [vmem:[%s932 + $0x34] sm:$0xf]
      %v947 = vld [vmem:[%s932 + $0x38] sm:$0xf]
      %v948 = vld [vmem:[%s932 + $0x3c] sm:$0xf]
      %v949 = vld [vmem:[%s932 + $0x40] sm:$0xf]
      %v950 = vld [vmem:[%s932 + $0x44] sm:$0xf]
      %v951 = vld [vmem:[%s932 + $0x48] sm:$0xf]
      %v952 = vld [vmem:[%s932 + $0x4c] sm:$0xf]
      %v953 = vld [vmem:[%s932 + $0x50] sm:$0xf]
      %v954 = vld [vmem:[%s932 + $0x54] sm:$0xf]
      %v955 = vld [vmem:[%s932 + $0x58] sm:$0xf]
      %v956 = vld [vmem:[%s932 + $0x5c] sm:$0xf]
      %v957 = vld [vmem:[%s932 + $0x60] sm:$0xf]
      %v958 = vld [vmem:[%s932 + $0x64] sm:$0xf]
      %v959 = vld [vmem:[%s932 + $0x68] sm:$0xf]
      %v960 = vld [vmem:[%s932 + $0x6c] sm:$0xf]
      %v961 = vld [vmem:[%s932 + $0x70] sm:$0xf]
      %v962 = vld [vmem:[%s932 + $0x74] sm:$0xf]
      %v963 = vld [vmem:[%s932 + $0x78] sm:$0xf]
      %v964 = vld [vmem:[%s932 + $0x7c] sm:$0xf]
      %s965 = scalar_lea.vmem %s230, 16
      %v966 = vld [vmem:[%s965] sm:$0xf]
      %v967 = vld [vmem:[%s965 + $0x4] sm:$0x3]
      %v1000 = vunpack.c.l.b16 %v933
      %v1001 = vunpack.c.l.b16 %v934
      %v1002 = vunpack.c.l.b16 %v935
      %v1003 = vunpack.c.l.b16 %v936
      %v1004 = vunpack.c.l.b16 %v937
      %v1005 = vunpack.c.l.b16 %v938
      %v1006 = vunpack.c.l.b16 %v939
      %v1007 = vunpack.c.l.b16 %v940
      %v1008 = vunpack.c.l.b16 %v941
      %v1009 = vunpack.c.l.b16 %v942
      %v1010 = vunpack.c.l.b16 %v943
      %v1011 = vunpack.c.l.b16 %v944
      %v1012 = vunpack.c.l.b16 %v945
      %v1013 = vunpack.c.l.b16 %v946
      %v1014 = vunpack.c.l.b16 %v947
      %v1015 = vunpack.c.l.b16 %v948
      %v1016 = vunpack.c.l.b16 %v949
      %v1017 = vunpack.c.l.b16 %v950
      %v1018 = vunpack.c.l.b16 %v951
      %v1019 = vunpack.c.l.b16 %v952
      %v1020 = vunpack.c.l.b16 %v953
      %v1021 = vunpack.c.l.b16 %v954
      %v1022 = vunpack.c.l.b16 %v955
      %v1023 = vunpack.c.l.b16 %v956
      %v1024 = vunpack.c.l.b16 %v957
      %v1025 = vunpack.c.l.b16 %v958
      %v1026 = vunpack.c.l.b16 %v959
      %v1027 = vunpack.c.l.b16 %v960
      %v1028 = vunpack.c.l.b16 %v961
      %v1029 = vunpack.c.l.b16 %v962
      %v1030 = vunpack.c.l.b16 %v963
      %v1031 = vunpack.c.l.b16 %v964
      %v1032 = vpack.c.b16 %v1001, %v1000
      %v1033 = vpack.c.b16 %v1003, %v1002
      %v1034 = vpack.c.b16 %v1005, %v1004
      %v1035 = vpack.c.b16 %v1007, %v1006
      %v1036 = vpack.c.b16 %v1009, %v1008
      %v1037 = vpack.c.b16 %v1011, %v1010
      %v1038 = vpack.c.b16 %v1013, %v1012
      %v1039 = vpack.c.b16 %v1015, %v1014
      %v1040 = vpack.c.b16 %v1017, %v1016
      %v1041 = vpack.c.b16 %v1019, %v1018
      %v1042 = vpack.c.b16 %v1021, %v1020
      %v1043 = vpack.c.b16 %v1023, %v1022
      %v1044 = vpack.c.b16 %v1025, %v1024
      %v1045 = vpack.c.b16 %v1027, %v1026
      %v1046 = vpack.c.b16 %v1029, %v1028
      %v1047 = vpack.c.b16 %v1031, %v1030
      %v1050 = vunpack.c.l.b16 %v966
      %v1051 = vunpack.c.l.b16 %v967
      %v1052 = vpack.c.b16 %v1051, %v1050
      %v1054 = vsel %vm418, %v1032, 0
      %v1057 = vsel %vm418, %v1033, 0
      %v1060 = vsel %vm418, %v1034, 0
      %v1063 = vsel %vm418, %v1035, 0
      %v1066 = vsel %vm418, %v1036, 0
      %v1069 = vsel %vm418, %v1037, 0
      %v1072 = vsel %vm418, %v1038, 0
      %v1075 = vsel %vm418, %v1039, 0
      %v1078 = vsel %vm418, %v1040, 0
      %v1081 = vsel %vm418, %v1041, 0
      %v1084 = vsel %vm418, %v1042, 0
      %v1087 = vsel %vm418, %v1043, 0
      %v1090 = vsel %vm418, %v1044, 0
      %v1093 = vsel %vm418, %v1045, 0
      %v1096 = vsel %vm418, %v1046, 0
      %v1099 = vsel %vm418, %v1047, 0
      %v1102 = vsel %vm467, %v1052, 0
      %1104 = vmatprep.subr.bf16.mxu0 0
      %1105 = vmatpush1.bf16.msra.mxu0 0
      %1106 = vmatprep.subr.bf16.mxu0 0
      %1107 = vmatpush1.bf16.msra.mxu0 0
      %1108 = vmatprep.subr.bf16.mxu0 0
      %1109 = vmatpush1.bf16.msra.mxu0 0
      %1110 = vmatprep.subr.bf16.mxu0 0
      %1111 = vmatpush1.bf16.msra.mxu0 0
      %1112 = vmatprep.subr.bf16.mxu0 0
      %1113 = vmatpush1.bf16.msra.mxu0 0
      %1114 = vmatprep.subr.bf16.mxu0 0
      %1115 = vmatpush1.bf16.msra.mxu0 0
      %1116 = vmatprep.subr.bf16.mxu0 0
      %1117 = vmatpush1.bf16.msra.mxu0 0
      %1118 = vmatprep.subr.bf16.mxu0 0
      %1119 = vmatpush1.bf16.msra.mxu0 %v1102
      %1120 = vmatprep.subr.bf16.mxu0 0
      %1121 = vmatpush2.bf16.msra.mxu0 0
      %1122 = vmatprep.subr.bf16.mxu0 0
      %1123 = vmatpush2.bf16.msra.mxu0 0
      %1124 = vmatprep.subr.bf16.mxu0 0
      %1125 = vmatpush2.bf16.msra.mxu0 0
      %1126 = vmatprep.subr.bf16.mxu0 0
      %1127 = vmatpush2.bf16.msra.mxu0 0
      %1128 = vmatprep.subr.bf16.mxu0 0
      %1129 = vmatpush2.bf16.msra.mxu0 0
      %1130 = vmatprep.subr.bf16.mxu0 0
      %1131 = vmatpush2.bf16.msra.mxu0 0
      %1132 = vmatprep.subr.bf16.mxu0 0
      %1133 = vmatpush2.bf16.msra.mxu0 0
      %1134 = vmatprep.subr.bf16.mxu0 0
      %1135 = vmatpush2.bf16.msra.mxu0 0
      %1136 = vmatprep.mubr.bf16.mxu0 0
      %1137 = vmatmul.mubr.bf16.gmra.mxu0 %v1054
      %v1138 = vpop.f32.mrf.mxu0
      %v1139 = vadd.f32 0.0, %v1138
      %v1140 = vpop.f32.mrf.mxu0
      %v1141 = vpop.f32.mrf.mxu0
      %v1142 = vadd.f32 0.0, %v1141
      %v1143 = vpop.f32.mrf.mxu0
      %1144 = vmatprep.mubr.bf16.mxu0 0
      %1145 = vmatmul.mubr.bf16.gmra.mxu0 %v1057
      %v1146 = vpop.f32.mrf.mxu0
      %v1147 = vadd.f32 0.0, %v1146
      %v1148 = vpop.f32.mrf.mxu0
      %v1149 = vpop.f32.mrf.mxu0
      %v1150 = vadd.f32 0.0, %v1149
      %v1151 = vpop.f32.mrf.mxu0
      %1152 = vmatprep.mubr.bf16.mxu0 0
      %1153 = vmatmul.mubr.bf16.gmra.mxu0 %v1060
      %v1154 = vpop.f32.mrf.mxu0
      %v1155 = vadd.f32 0.0, %v1154
      %v1156 = vpop.f32.mrf.mxu0
      %v1157 = vpop.f32.mrf.mxu0
      %v1158 = vadd.f32 0.0, %v1157
      %v1159 = vpop.f32.mrf.mxu0
      %1160 = vmatprep.mubr.bf16.mxu0 0
      %1161 = vmatmul.mubr.bf16.gmra.mxu0 %v1063
      %v1162 = vpop.f32.mrf.mxu0
      %v1163 = vadd.f32 0.0, %v1162
      %v1164 = vpop.f32.mrf.mxu0
      %v1165 = vpop.f32.mrf.mxu0
      %v1166 = vadd.f32 0.0, %v1165
      %v1167 = vpop.f32.mrf.mxu0
      %1168 = vmatprep.mubr.bf16.mxu0 0
      %1169 = vmatmul.mubr.bf16.gmra.mxu0 %v1066
      %v1170 = vpop.f32.mrf.mxu0
      %v1171 = vadd.f32 0.0, %v1170
      %v1172 = vpop.f32.mrf.mxu0
      %v1173 = vpop.f32.mrf.mxu0
      %v1174 = vadd.f32 0.0, %v1173
      %v1175 = vpop.f32.mrf.mxu0
      %1176 = vmatprep.mubr.bf16.mxu0 0
      %1177 = vmatmul.mubr.bf16.gmra.mxu0 %v1069
      %v1178 = vpop.f32.mrf.mxu0
      %v1179 = vadd.f32 0.0, %v1178
      %v1180 = vpop.f32.mrf.mxu0
      %v1181 = vpop.f32.mrf.mxu0
      %v1182 = vadd.f32 0.0, %v1181
      %v1183 = vpop.f32.mrf.mxu0
      %1184 = vmatprep.mubr.bf16.mxu0 0
      %1185 = vmatmul.mubr.bf16.gmra.mxu0 %v1072
      %v1186 = vpop.f32.mrf.mxu0
      %v1187 = vadd.f32 0.0, %v1186
      %v1188 = vpop.f32.mrf.mxu0
      %v1189 = vpop.f32.mrf.mxu0
      %v1190 = vadd.f32 0.0, %v1189
      %v1191 = vpop.f32.mrf.mxu0
      %1192 = vmatprep.mubr.bf16.mxu0 0
      %1193 = vmatmul.mubr.bf16.gmra.mxu0 %v1075
      %v1194 = vpop.f32.mrf.mxu0
      %v1195 = vadd.f32 0.0, %v1194
      %v1196 = vpop.f32.mrf.mxu0
      %v1197 = vpop.f32.mrf.mxu0
      %v1198 = vadd.f32 0.0, %v1197
      %v1199 = vpop.f32.mrf.mxu0
      %1200 = vmatprep.mubr.bf16.mxu0 0
      %1201 = vmatmul.mubr.bf16.gmra.mxu0 %v1078
      %v1202 = vpop.f32.mrf.mxu0
      %v1203 = vadd.f32 0.0, %v1202
      %v1204 = vpop.f32.mrf.mxu0
      %v1205 = vpop.f32.mrf.mxu0
      %v1206 = vadd.f32 0.0, %v1205
      %v1207 = vpop.f32.mrf.mxu0
      %1208 = vmatprep.mubr.bf16.mxu0 0
      %1209 = vmatmul.mubr.bf16.gmra.mxu0 %v1081
      %v1210 = vpop.f32.mrf.mxu0
      %v1211 = vadd.f32 0.0, %v1210
      %v1212 = vpop.f32.mrf.mxu0
      %v1213 = vpop.f32.mrf.mxu0
      %v1214 = vadd.f32 0.0, %v1213
      %v1215 = vpop.f32.mrf.mxu0
      %1216 = vmatprep.mubr.bf16.mxu0 0
      %1217 = vmatmul.mubr.bf16.gmra.mxu0 %v1084
      %v1218 = vpop.f32.mrf.mxu0
      %v1219 = vadd.f32 0.0, %v1218
      %v1220 = vpop.f32.mrf.mxu0
      %v1221 = vpop.f32.mrf.mxu0
      %v1222 = vadd.f32 0.0, %v1221
      %v1223 = vpop.f32.mrf.mxu0
      %1224 = vmatprep.mubr.bf16.mxu0 0
      %1225 = vmatmul.mubr.bf16.gmra.mxu0 %v1087
      %v1226 = vpop.f32.mrf.mxu0
      %v1227 = vadd.f32 0.0, %v1226
      %v1228 = vpop.f32.mrf.mxu0
      %v1229 = vpop.f32.mrf.mxu0
      %v1230 = vadd.f32 0.0, %v1229
      %v1231 = vpop.f32.mrf.mxu0
      %1232 = vmatprep.mubr.bf16.mxu0 0
      %1233 = vmatmul.mubr.bf16.gmra.mxu0 %v1090
      %v1234 = vpop.f32.mrf.mxu0
      %v1235 = vadd.f32 0.0, %v1234
      %v1236 = vpop.f32.mrf.mxu0
      %v1237 = vpop.f32.mrf.mxu0
      %v1238 = vadd.f32 0.0, %v1237
      %v1239 = vpop.f32.mrf.mxu0
      %1240 = vmatprep.mubr.bf16.mxu0 0
      %1241 = vmatmul.mubr.bf16.gmra.mxu0 %v1093
      %v1242 = vpop.f32.mrf.mxu0
      %v1243 = vadd.f32 0.0, %v1242
      %v1244 = vpop.f32.mrf.mxu0
      %v1245 = vpop.f32.mrf.mxu0
      %v1246 = vadd.f32 0.0, %v1245
      %v1247 = vpop.f32.mrf.mxu0
      %1248 = vmatprep.mubr.bf16.mxu0 0
      %1249 = vmatmul.mubr.bf16.gmra.mxu0 %v1096
      %v1250 = vpop.f32.mrf.mxu0
      %v1251 = vadd.f32 0.0, %v1250
      %v1252 = vpop.f32.mrf.mxu0
      %v1253 = vpop.f32.mrf.mxu0
      %v1254 = vadd.f32 0.0, %v1253
      %v1255 = vpop.f32.mrf.mxu0
      %1256 = vmatprep.mubr.bf16.mxu0 0
      %1257 = vmatmul.mubr.bf16.gmra.mxu0 %v1099
      %v1258 = vpop.f32.mrf.mxu0
      %v1259 = vadd.f32 0.0, %v1258
      %v1260 = vpop.f32.mrf.mxu0
      %v1261 = vpop.f32.mrf.mxu0
      %v1262 = vadd.f32 0.0, %v1261
      %v1263 = vpop.f32.mrf.mxu0
      %1264 = vdwg.mxu0
      %v1265 = vadd.f32 %v803, %v1139
      %v1266 = vadd.f32 %v806, %v1142
      %v1267 = vadd.f32 %v811, %v1147
      %v1268 = vadd.f32 %v814, %v1150
      %v1269 = vadd.f32 %v819, %v1155
      %v1270 = vadd.f32 %v822, %v1158
      %v1271 = vadd.f32 %v827, %v1163
      %v1272 = vadd.f32 %v830, %v1166
      %v1273 = vadd.f32 %v835, %v1171
      %v1274 = vadd.f32 %v838, %v1174
      %v1275 = vadd.f32 %v843, %v1179
      %v1276 = vadd.f32 %v846, %v1182
      %v1277 = vadd.f32 %v851, %v1187
      %v1278 = vadd.f32 %v854, %v1190
      %v1279 = vadd.f32 %v859, %v1195
      %v1280 = vadd.f32 %v862, %v1198
      %v1281 = vadd.f32 %v867, %v1203
      %v1282 = vadd.f32 %v870, %v1206
      %v1283 = vadd.f32 %v875, %v1211
      %v1284 = vadd.f32 %v878, %v1214
      %v1285 = vadd.f32 %v883, %v1219
      %v1286 = vadd.f32 %v886, %v1222
      %v1287 = vadd.f32 %v891, %v1227
      %v1288 = vadd.f32 %v894, %v1230
      %v1289 = vadd.f32 %v899, %v1235
      %v1290 = vadd.f32 %v902, %v1238
      %v1291 = vadd.f32 %v907, %v1243
      %v1292 = vadd.f32 %v910, %v1246
      %v1293 = vadd.f32 %v915, %v1251
      %v1294 = vadd.f32 %v918, %v1254
      %v1295 = vadd.f32 %v923, %v1259
      %v1296 = vadd.f32 %v926, %v1262
      %v1297 = vpack.c.bf16 %v1266, %v1265
      %v1298 = vpack.c.bf16 %v1268, %v1267
      %v1299 = vpack.c.bf16 %v1270, %v1269
      %v1300 = vpack.c.bf16 %v1272, %v1271
      %v1301 = vpack.c.bf16 %v1274, %v1273
      %v1302 = vpack.c.bf16 %v1276, %v1275
      %v1303 = vpack.c.bf16 %v1278, %v1277
      %v1304 = vpack.c.bf16 %v1280, %v1279
      %v1305 = vpack.c.bf16 %v1282, %v1281
      %v1306 = vpack.c.bf16 %v1284, %v1283
      %v1307 = vpack.c.bf16 %v1286, %v1285
      %v1308 = vpack.c.bf16 %v1288, %v1287
      %v1309 = vpack.c.bf16 %v1290, %v1289
      %v1310 = vpack.c.bf16 %v1292, %v1291
      %v1311 = vpack.c.bf16 %v1294, %v1293
      %v1312 = vpack.c.bf16 %v1296, %v1295
      %v1329 = vunpack.c.l.b16 %v1297
      %v1330 = vunpack.c.h.b16 %v1297
      %v1331 = vunpack.c.l.b16 %v1298
      %v1332 = vunpack.c.h.b16 %v1298
      %v1333 = vunpack.c.l.b16 %v1299
      %v1334 = vunpack.c.h.b16 %v1299
      %v1335 = vunpack.c.l.b16 %v1300
      %v1336 = vunpack.c.h.b16 %v1300
      %v1337 = vunpack.c.l.b16 %v1301
      %v1338 = vunpack.c.h.b16 %v1301
      %v1339 = vunpack.c.l.b16 %v1302
      %v1340 = vunpack.c.h.b16 %v1302
      %v1341 = vunpack.c.l.b16 %v1303
      %v1342 = vunpack.c.h.b16 %v1303
      %v1343 = vunpack.c.l.b16 %v1304
      %v1344 = vunpack.c.h.b16 %v1304
      %v1345 = vunpack.c.l.b16 %v1305
      %v1346 = vunpack.c.h.b16 %v1305
      %v1347 = vunpack.c.l.b16 %v1306
      %v1348 = vunpack.c.h.b16 %v1306
      %v1349 = vunpack.c.l.b16 %v1307
      %v1350 = vunpack.c.h.b16 %v1307
      %v1351 = vunpack.c.l.b16 %v1308
      %v1352 = vunpack.c.h.b16 %v1308
      %v1353 = vunpack.c.l.b16 %v1309
      %v1354 = vunpack.c.h.b16 %v1309
      %v1355 = vunpack.c.l.b16 %v1310
      %v1356 = vunpack.c.h.b16 %v1310
      %v1357 = vunpack.c.l.b16 %v1311
      %v1358 = vunpack.c.h.b16 %v1311
      %v1359 = vunpack.c.l.b16 %v1312
      %v1360 = vunpack.c.h.b16 %v1312
      %v1361 = vpack.c.b16 %v1329, %v1329
      %v1362 = vpack.c.b16 %v1330, %v1330
      %v1363 = vpack.c.b16 %v1331, %v1331
      %v1364 = vpack.c.b16 %v1332, %v1332
      %v1365 = vpack.c.b16 %v1333, %v1333
      %v1366 = vpack.c.b16 %v1334, %v1334
      %v1367 = vpack.c.b16 %v1335, %v1335
      %v1368 = vpack.c.b16 %v1336, %v1336
      %v1369 = vpack.c.b16 %v1337, %v1337
      %v1370 = vpack.c.b16 %v1338, %v1338
      %v1371 = vpack.c.b16 %v1339, %v1339
      %v1372 = vpack.c.b16 %v1340, %v1340
      %v1373 = vpack.c.b16 %v1341, %v1341
      %v1374 = vpack.c.b16 %v1342, %v1342
      %v1375 = vpack.c.b16 %v1343, %v1343
      %v1376 = vpack.c.b16 %v1344, %v1344
      %v1377 = vpack.c.b16 %v1345, %v1345
      %v1378 = vpack.c.b16 %v1346, %v1346
      %v1379 = vpack.c.b16 %v1347, %v1347
      %v1380 = vpack.c.b16 %v1348, %v1348
      %v1381 = vpack.c.b16 %v1349, %v1349
      %v1382 = vpack.c.b16 %v1350, %v1350
      %v1383 = vpack.c.b16 %v1351, %v1351
      %v1384 = vpack.c.b16 %v1352, %v1352
      %v1385 = vpack.c.b16 %v1353, %v1353
      %v1386 = vpack.c.b16 %v1354, %v1354
      %v1387 = vpack.c.b16 %v1355, %v1355
      %v1388 = vpack.c.b16 %v1356, %v1356
      %v1389 = vpack.c.b16 %v1357, %v1357
      %v1390 = vpack.c.b16 %v1358, %v1358
      %v1391 = vpack.c.b16 %v1359, %v1359
      %v1392 = vpack.c.b16 %v1360, %v1360
      %1425 = vst [vmem:[%s243] sm:$0xf] %v1361
      %1426 = vst [vmem:[%s243 + $0x4] sm:$0xf] %v1362
      %1427 = vst [vmem:[%s243 + $0x8] sm:$0xf] %v1363
      %1428 = vst [vmem:[%s243 + $0xc] sm:$0xf] %v1364
      %1429 = vst [vmem:[%s243 + $0x10] sm:$0xf] %v1365
      %1430 = vst [vmem:[%s243 + $0x14] sm:$0xf] %v1366
      %1431 = vst [vmem:[%s243 + $0x18] sm:$0xf] %v1367
      %1432 = vst [vmem:[%s243 + $0x1c] sm:$0xf] %v1368
      %1433 = vst [vmem:[%s243 + $0x20] sm:$0xf] %v1369
      %1434 = vst [vmem:[%s243 + $0x24] sm:$0xf] %v1370
      %1435 = vst [vmem:[%s243 + $0x28] sm:$0xf] %v1371
      %1436 = vst [vmem:[%s243 + $0x2c] sm:$0xf] %v1372
      %1437 = vst [vmem:[%s243 + $0x30] sm:$0xf] %v1373
      %1438 = vst [vmem:[%s243 + $0x34] sm:$0xf] %v1374
      %1439 = vst [vmem:[%s243 + $0x38] sm:$0xf] %v1375
      %1440 = vst [vmem:[%s243 + $0x3c] sm:$0xf] %v1376
      %1441 = vst [vmem:[%s243 + $0x40] sm:$0xf] %v1377
      %1442 = vst [vmem:[%s243 + $0x44] sm:$0xf] %v1378
      %1443 = vst [vmem:[%s243 + $0x48] sm:$0xf] %v1379
      %1444 = vst [vmem:[%s243 + $0x4c] sm:$0xf] %v1380
      %1445 = vst [vmem:[%s243 + $0x50] sm:$0xf] %v1381
      %1446 = vst [vmem:[%s243 + $0x54] sm:$0xf] %v1382
      %1447 = vst [vmem:[%s243 + $0x58] sm:$0xf] %v1383
      %1448 = vst [vmem:[%s243 + $0x5c] sm:$0xf] %v1384
      %1449 = vst [vmem:[%s243 + $0x60] sm:$0xf] %v1385
      %1450 = vst [vmem:[%s243 + $0x64] sm:$0xf] %v1386
      %1451 = vst [vmem:[%s243 + $0x68] sm:$0xf] %v1387
      %1452 = vst [vmem:[%s243 + $0x6c] sm:$0xf] %v1388
      %1453 = vst [vmem:[%s243 + $0x70] sm:$0xf] %v1389
      %1454 = vst [vmem:[%s243 + $0x74] sm:$0xf] %v1390
      %1455 = vst [vmem:[%s243 + $0x78] sm:$0xf] %v1391
      %1456 = vst [vmem:[%s243 + $0x7c] sm:$0xf] %v1392
      %v1457 = vadd.f32 %v1265, %v1266
      %v1458 = vadd.f32 %v1457, %v1267
      %v1459 = vadd.f32 %v1458, %v1268
      %v1460 = vadd.f32 %v1459, %v1269
      %v1461 = vadd.f32 %v1460, %v1270
      %v1462 = vadd.f32 %v1461, %v1271
      %v1463 = vadd.f32 %v1462, %v1272
      %v1464 = vadd.f32 %v1463, %v1273
      %v1465 = vadd.f32 %v1464, %v1274
      %v1466 = vadd.f32 %v1465, %v1275
      %v1467 = vadd.f32 %v1466, %v1276
      %v1468 = vadd.f32 %v1467, %v1277
      %v1469 = vadd.f32 %v1468, %v1278
      %v1470 = vadd.f32 %v1469, %v1279
      %v1471 = vadd.f32 %v1470, %v1280
      %v1472 = vadd.f32 %v1471, %v1281
      %v1473 = vadd.f32 %v1472, %v1282
      %v1474 = vadd.f32 %v1473, %v1283
      %v1475 = vadd.f32 %v1474, %v1284
      %v1476 = vadd.f32 %v1475, %v1285
      %v1477 = vadd.f32 %v1476, %v1286
      %v1478 = vadd.f32 %v1477, %v1287
      %v1479 = vadd.f32 %v1478, %v1288
      %v1480 = vadd.f32 %v1479, %v1289
      %v1481 = vadd.f32 %v1480, %v1290
      %v1482 = vadd.f32 %v1481, %v1291
      %v1483 = vadd.f32 %v1482, %v1292
      %v1484 = vadd.f32 %v1483, %v1293
      %v1485 = vadd.f32 %v1484, %v1294
      %v1486 = vadd.f32 %v1485, %v1295
      %v1487 = vadd.f32 %v1486, %v1296
      %v1488 = vrot.slane %v1487, 4
      %v1489 = vadd.f32 %v1487, %v1488
      %v1490 = vrot.slane %v1489, 2
      %v1491 = vadd.f32 %v1489, %v1490
      %v1492 = vrot.slane %v1491, 1
      %v1493 = vadd.f32 %v1491, %v1492
      %v1494 = vmul.f32 %v1265, %v1265
      %v1495 = vmul.f32 %v1266, %v1266
      %v1496 = vmul.f32 %v1267, %v1267
      %v1497 = vmul.f32 %v1268, %v1268
      %v1498 = vmul.f32 %v1269, %v1269
      %v1499 = vmul.f32 %v1270, %v1270
      %v1500 = vmul.f32 %v1271, %v1271
      %v1501 = vmul.f32 %v1272, %v1272
      %v1502 = vmul.f32 %v1273, %v1273
      %v1503 = vmul.f32 %v1274, %v1274
      %v1504 = vmul.f32 %v1275, %v1275
      %v1505 = vmul.f32 %v1276, %v1276
      %v1506 = vmul.f32 %v1277, %v1277
      %v1507 = vmul.f32 %v1278, %v1278
      %v1508 = vmul.f32 %v1279, %v1279
      %v1509 = vmul.f32 %v1280, %v1280
      %v1510 = vmul.f32 %v1281, %v1281
      %v1511 = vmul.f32 %v1282, %v1282
      %v1512 = vmul.f32 %v1283, %v1283
      %v1513 = vmul.f32 %v1284, %v1284
      %v1514 = vmul.f32 %v1285, %v1285
      %v1515 = vmul.f32 %v1286, %v1286
      %v1516 = vmul.f32 %v1287, %v1287
      %v1517 = vmul.f32 %v1288, %v1288
      %v1518 = vmul.f32 %v1289, %v1289
      %v1519 = vmul.f32 %v1290, %v1290
      %v1520 = vmul.f32 %v1291, %v1291
      %v1521 = vmul.f32 %v1292, %v1292
      %v1522 = vmul.f32 %v1293, %v1293
      %v1523 = vmul.f32 %v1294, %v1294
      %v1524 = vmul.f32 %v1295, %v1295
      %v1525 = vmul.f32 %v1296, %v1296
      %v1526 = vadd.f32 %v1494, %v1495
      %v1527 = vadd.f32 %v1526, %v1496
      %v1528 = vadd.f32 %v1527, %v1497
      %v1529 = vadd.f32 %v1528, %v1498
      %v1530 = vadd.f32 %v1529, %v1499
      %v1531 = vadd.f32 %v1530, %v1500
      %v1532 = vadd.f32 %v1531, %v1501
      %v1533 = vadd.f32 %v1532, %v1502
      %v1534 = vadd.f32 %v1533, %v1503
      %v1535 = vadd.f32 %v1534, %v1504
      %v1536 = vadd.f32 %v1535, %v1505
      %v1537 = vadd.f32 %v1536, %v1506
      %v1538 = vadd.f32 %v1537, %v1507
      %v1539 = vadd.f32 %v1538, %v1508
      %v1540 = vadd.f32 %v1539, %v1509
      %v1541 = vadd.f32 %v1540, %v1510
      %v1542 = vadd.f32 %v1541, %v1511
      %v1543 = vadd.f32 %v1542, %v1512
      %v1544 = vadd.f32 %v1543, %v1513
      %v1545 = vadd.f32 %v1544, %v1514
      %v1546 = vadd.f32 %v1545, %v1515
      %v1547 = vadd.f32 %v1546, %v1516
      %v1548 = vadd.f32 %v1547, %v1517
      %v1549 = vadd.f32 %v1548, %v1518
      %v1550 = vadd.f32 %v1549, %v1519
      %v1551 = vadd.f32 %v1550, %v1520
      %v1552 = vadd.f32 %v1551, %v1521
      %v1553 = vadd.f32 %v1552, %v1522
      %v1554 = vadd.f32 %v1553, %v1523
      %v1555 = vadd.f32 %v1554, %v1524
      %v1556 = vadd.f32 %v1555, %v1525
      %v1557 = vrot.slane %v1556, 4
      %v1558 = vadd.f32 %v1556, %v1557
      %v1559 = vrot.slane %v1558, 2
      %v1560 = vadd.f32 %v1558, %v1559
      %v1561 = vrot.slane %v1560, 1
      %v1562 = vadd.f32 %v1560, %v1561
      %vm1563 = vcmask 1040384
      %v1564 = vsel %vm1563, %v1493, %v1562
      %vm1565 = vcmask 1041408
      %v1566 = vsel %vm1565, %v1564, 0.0
      %1567 = vst [vmem:[%s254] sm:$0xff] %v1566
      %s1568 = smul.u32 16, %s22
      %p1569 = scmp.lt.s32.totalorder %s20, 1
      %s1570 = scalar_select %p1569, %s20, 1
      %p1571 = scmp.lt.s32.totalorder %s1568, 15
      %s1572 = scalar_select %p1571, %s1568, 15
      %p1573 = scmp.lt.s32.totalorder %s21, 0
      %s1574 = scalar_select %p1573, %s21, 0
      %s1575 = smul.addr %s1572, 2
      %s1576 = sadd.s32 %s1574, %s1575
      %s1577 = smul.addr %s1570, 32
      %s1578 = sadd.s32 %s1576, %s1577
      %s1579 = smul.addr %s1578, 4
      %s1580 = scalar_lea.vmem %s2, %s1579
      %p1581 = scmp.lt.s32.totalorder %s20, 1
      %s1582 = scalar_select %p1581, %s20, 1
      %p1583 = scmp.lt.s32.totalorder %s22, 0
      %s1584 = scalar_select %p1583, %s22, 0
      %p1585 = scmp.lt.s32.totalorder %s21, 0
      %s1586 = scalar_select %p1585, %s21, 0
      %s1587 = sadd.s32 %s1586, %s1584
      %s1588 = sadd.s32 %s1587, %s1582
      %s1589 = smul.addr %s1588, 8
      %s1590 = scalar_lea.vmem %s3, %s1589
      // Predicated region
      $region29: #{basic_conv_forward.2} parent=27 // pred_check
        %p1591 = pneg %p108
      $region30: #{basic_conv_forward.2} parent=27 // pred_check_branch
        %1593 = sbr.rel (%p1591) target = $region32
      $region31: #{basic_conv_forward.2} parent=27 // pred_region
        %s1594 = smul.u32 16, %s22
      $region32: #{basic_conv_forward.2} parent=27 // pred_fallthru
        _
      // Predicated region
      $region33: #{basic_conv_forward.2} parent=27 // pred_check
        %p1595 = pneg %p138
      $region34: #{basic_conv_forward.2} parent=27 // pred_check_branch
        %1597 = sbr.rel (%p1595) target = $region36
      $region35: #{basic_conv_forward.2} parent=27 // pred_region
        _
      $region36: #{basic_conv_forward.2} parent=27 // pred_fallthru
        _
    $region28: #{basic_conv_forward.2} parent=5 // pred_fallthru
      _
    %p1598 = scmp.le.s32.totalorder 2, %s10
    // Predicated region
    $region37: #{basic_conv_forward.2} parent=5 // pred_check
      %p1599 = pneg %p1598
    $region38: #{basic_conv_forward.2} parent=5 // pred_check_branch
      %1601 = sbr.rel (%p1599) target = $region40
    $region39: #{basic_conv_forward.2} parent=5 // pred_region
      %s1602 = ssub.s32 %s10, 2
      // Predicated region
      $region41: #{basic_conv_forward.2} parent=39 // pred_check
        %p1603 = pneg %p114
      $region42: #{basic_conv_forward.2} parent=39 // pred_check_branch
        %1605 = sbr.rel (%p1603) target = $region44
      $region43: #{basic_conv_forward.2} parent=39 // pred_region
        %s1606 = smul.u32 16, %s25
        %p1607 = scmp.lt.s32.totalorder %s23, 1
        %s1608 = scalar_select %p1607, %s23, 1
        %p1609 = scmp.lt.s32.totalorder %s1606, 15
        %s1610 = scalar_select %p1609, %s1606, 15
        %p1611 = scmp.lt.s32.totalorder %s24, 0
        %s1612 = scalar_select %p1611, %s24, 0
        %s1613 = smul.addr %s1610, 2
        %s1614 = sadd.s32 %s1612, %s1613
        %s1615 = smul.addr %s1608, 32
        %s1616 = sadd.s32 %s1614, %s1615
        %s1617 = smul.addr %s1616, 4
        %s1618 = scalar_lea.vmem %s2, %s1617
      $region44: #{basic_conv_forward.2} parent=39 // pred_fallthru
        _
      // Predicated region
      $region45: #{basic_conv_forward.2} parent=39 // pred_check
        %p1619 = pneg %p144
      $region46: #{basic_conv_forward.2} parent=39 // pred_check_branch
        %1621 = sbr.rel (%p1619) target = $region48
      $region47: #{basic_conv_forward.2} parent=39 // pred_region
        %p1622 = scmp.lt.s32.totalorder %s23, 1
        %s1623 = scalar_select %p1622, %s23, 1
        %p1624 = scmp.lt.s32.totalorder %s25, 0
        %s1625 = scalar_select %p1624, %s25, 0
        %p1626 = scmp.lt.s32.totalorder %s24, 0
        %s1627 = scalar_select %p1626, %s24, 0
        %s1628 = sadd.s32 %s1627, %s1625
        %s1629 = sadd.s32 %s1628, %s1623
        %s1630 = smul.addr %s1629, 8
        %s1631 = scalar_lea.vmem %s3, %s1630
      $region48: #{basic_conv_forward.2} parent=39 // pred_fallthru
        _
    $region40: #{basic_conv_forward.2} parent=5 // pred_fallthru
      _
  $region6: #{basic_conv_forward.2} parent=0 // loop_footer
    %s14 = sadd.s32 1, %s10
  $region7: #{basic_conv_forward.2} parent=0 // loop_footer_branch
    %9 = sbr.rel target = $region3
  $region8: #{basic_conv_forward.2} parent=0 // loop_exit
    _

</llo_original>
